<compile_context>
chip_gen: v5e
topology: v5e:2x2
jax: 0.10.0
libtpu: 0.0.40
codegen_flags: <defaults>
</compile_context>

<pallas_src>
import functools

import numpy as np
import jax
import jax.numpy as jnp
from jax.experimental import pallas as pl
from jax.experimental.pallas import tpu as pltpu


# ----------------------------------------------------------------------------
# Fused multi-step kernel.
# ----------------------------------------------------------------------------
def _make_som_kernel(n_cols, beta, sigma):
    sigma_op = float(sigma) * float(beta)
    inv_s2 = 1.0 / (sigma_op * sigma_op)
    n_f = float(n_cols)
    beta_f = float(beta)

    def kernel(tr_ref,        # (T, 2) int32  SMEM (scalar prefetch): [lstm, real] per step
               x_ref,         # (1, N, D) f32 per-step sample slab (streamed)
               w_init_ref,    # (D, M) f32    initial weights (resident input)
               ol_init_ref,   # (1, M) i32    initial output layer (resident input)
               new_w_ref,     # (D, M) f32    carried weights (resident output)
               new_ol_ref,    # (1, M) i32    carried output layer (resident output)
               pb_ref,        # (2, T) i32    row 0 = penalty, row 1 = bmu (resident output)
               dists_ref):    # (1, 1, M) f32 per-step distances (streamed output)
        t = pl.program_id(0)

        # ---- step-0 init: pull carried state into the resident output blocks ----
        @pl.when(t == 0)
        def _init():
            new_w_ref[...] = w_init_ref[...]
            new_ol_ref[...] = ol_init_ref[...]
            pb_ref[...] = jnp.zeros_like(pb_ref)

        x = x_ref[0]                         # (N, D) samples x features
        w = new_w_ref[...]                   # (D, M) current weights (transposed layout)
        ol = new_ol_ref[...]                 # (1, M) current output layer
        n_samples = x.shape[0]
        M = w.shape[1]

        # ---- pairwise squared distances, summed over samples ---------------------
        x_norm = jnp.sum(x * x, axis=1, keepdims=True)             # (N, 1)
        w_norm = jnp.sum(w * w, axis=0, keepdims=True)             # (1, M)
        s = jnp.dot(x, w,                                          # (N, M), MXU-native
                    precision=jax.lax.Precision.HIGHEST,
                    preferred_element_type=jnp.float32)
        d = x_norm + w_norm - 2.0 * s
        d = jnp.where(jnp.isnan(d), 0.0, d)                        # dist[dist != dist] = 0
        d = jnp.maximum(d, 0.0)                                    # clamp(dist, 0, inf)
        dists = jnp.sqrt(jnp.sum(d, axis=0, keepdims=True))        # (1, M)
        dists_ref[0] = dists

        # ---- BMU: first index of the minimum (matches torch.min) -----------------
        lane = jax.lax.broadcasted_iota(jnp.int32, (1, M), 1).astype(jnp.float32)
        dmin = jnp.min(dists, axis=1, keepdims=True)               # (1, 1)
        bmu_f = jnp.min(jnp.where(dists == dmin, lane, float(M)),
                        axis=1, keepdims=True)                     # (1, 1) first min idx
        bmu_mask = lane == bmu_f                                   # (1, M) one-hot
        bmu_i = bmu_f.astype(jnp.int32)

        # ---- penalty() branch logic (SMEM scalars + (1,1) vectors) ----------------
        lstm_t = tr_ref[t, 0]                                      # scalar i32
        real_t = tr_ref[t, 1]                                      # scalar i32
        som_t = jnp.sum(jnp.where(bmu_mask, ol.astype(jnp.float32), 0.0),
                        axis=1, keepdims=True).astype(jnp.int32)   # output_layer[bmu]
        e1 = real_t - lstm_t
        lstm_err = jnp.maximum(e1, -e1)
        e2 = real_t - som_t
        som_err = jnp.maximum(e2, -e2)
        mx = jnp.maximum(lstm_err, som_err)
        cond1 = mx == 0
        cond2 = jnp.logical_and(mx > 0, lstm_err == 0)
        cond3 = jnp.logical_and(mx > 0, som_err == 0)
        penalty = jnp.where(cond1, -1, jnp.where(cond2, 1, 0)).astype(jnp.int32)
        new_out = jnp.where(jnp.logical_or(cond1, cond2), lstm_t,
                            jnp.where(cond3, som_t, real_t)).astype(jnp.int32)
        update = jnp.where(jnp.logical_or(cond1, cond3), 1.0, 0.0)  # (1,1) f32 gate

        new_ol_ref[...] = jnp.where(bmu_mask, new_out, ol)

        # Packed per-step scalars: write lane t of the resident (2, T) block
        # (no per-step output DMA; one small writeback at the end of the grid).
        Tn = pb_ref.shape[1]
        sel = jax.lax.broadcasted_iota(jnp.int32, (1, Tn), 1) == t
        pb_ref[0:1, :] = jnp.where(sel, penalty, pb_ref[0:1, :])
        pb_ref[1:2, :] = jnp.where(sel, bmu_i, pb_ref[1:2, :])

        # ---- Gaussian-neighbourhood weight update (lane-dense lr chain) -----------
        ki = jnp.floor(lane / n_f)                                  # (1, M) neuron row
        kj = lane - ki * n_f                                        # (1, M) neuron col
        bi = jnp.floor(bmu_f / n_f)                                 # (1, 1)
        bj = bmu_f - bi * n_f
        di = ki - bi
        dj = kj - bj
        d2 = di * di + dj * dj                                      # (1, M)
        lr = (beta_f * jnp.exp(-d2 * inv_s2)) * update              # (1, M), gated
        # x.permute(1, 0)[-1] == last sample, as a (D, 1) column so lane-dense lr
        # broadcasts over sublanes and the column broadcasts over lanes.
        xc_col = x.T[:, n_samples - 1:n_samples]                    # (D, 1)
        # TODO(synk): optionally wrap in pl.when on a scalar update flag to skip the
        # exp+FMA on no-update steps; kept branchless since it is ~35 vector ops.
        new_w_ref[...] = w + lr * (xc_col - w)

    return kernel


# ----------------------------------------------------------------------------
# Functional multi-step forward (returns new state instead of mutating Parameters).
# ----------------------------------------------------------------------------
def som_forward_steps(weights, output_layer, xs, trends, *, n, beta, sigma):
    """Run T sequential SelfOrganizingMap.forward() steps in one fused pallas_call.

    weights:      (M, dim) f32     module layout (m*n, dim)
    output_layer: (M,) int         module output layer
    xs:           (T, dim, N) f32  per-step x in the module's (dim, N) layout
    trends:       (T, 2) int32     per-step [lstm_trend, real_trend]
    Returns (penalties (T,), new_weights (M, dim), new_output_layer (M,),
             bmus (T,), dists (T, M)).
    """
    M, D = weights.shape
    T = xs.shape[0]
    N = xs.shape[2]

    # Kernel-native layouts: transposed weight table, samples-major x.  In a real
    # training loop the (D, M) weights would be carried in this layout permanently
    # (together with buffer donation) instead of being re-transposed every call.
    w_t = jnp.asarray(weights, jnp.float32).T                          # (D, M)
    ol2d = jnp.asarray(output_layer, jnp.int32).reshape(1, M)          # (1, M)
    xs_nd = jnp.transpose(jnp.asarray(xs, jnp.float32), (0, 2, 1))     # (T, N, D)
    trends = jnp.asarray(trends, jnp.int32)

    new_w_t, new_ol, pb, dists = pl.pallas_call(
        _make_som_kernel(n, beta, sigma),
        out_shape=(
            jax.ShapeDtypeStruct((D, M), jnp.float32),    # new weights (transposed)
            jax.ShapeDtypeStruct((1, M), jnp.int32),      # new output layer
            jax.ShapeDtypeStruct((2, T), jnp.int32),      # [penalty; bmu] per step
            jax.ShapeDtypeStruct((T, 1, M), jnp.float32), # per-step distances
        ),
        grid_spec=pltpu.PrefetchScalarGridSpec(
            num_scalar_prefetch=1,                        # trends -> SMEM
            grid=(T,),
            in_specs=[
                pl.BlockSpec((1, N, D), lambda t, tr: (t, 0, 0)),   # x stream
                pl.BlockSpec((D, M), lambda t, tr: (0, 0)),          # init weights (resident)
                pl.BlockSpec((1, M), lambda t, tr: (0, 0)),          # init output layer
            ],
            out_specs=(
                pl.BlockSpec((D, M), lambda t, tr: (0, 0)),          # carried weights
                pl.BlockSpec((1, M), lambda t, tr: (0, 0)),          # carried output layer
                pl.BlockSpec((2, T), lambda t, tr: (0, 0)),          # packed penalty/bmu
                pl.BlockSpec((1, 1, M), lambda t, tr: (t, 0, 0)),    # per-step distances
            ),
        ),
        # weights -> new_weights, output_layer -> new_output_layer
        # (input indices count the scalar-prefetch operand as index 0).
        input_output_aliases={2: 0, 3: 1},
        compiler_params=pltpu.CompilerParams(
            dimension_semantics=("arbitrary",)),          # sequential carry across steps
    )(trends, xs_nd, w_t, ol2d)

    penalties = pb[0, :]
    bmus = pb[1, :]
    return penalties, new_w_t.T, new_ol.reshape(M), bmus, dists.reshape(T, M)


# ----------------------------------------------------------------------------
# Pure-numpy single-step reference (mirrors the PyTorch module).
# ----------------------------------------------------------------------------
def ref_forward(weights, output_layer, locations, x, lstm_trend, real_trend,
                beta, sigma):
    weights = np.asarray(weights, np.float32)
    output_layer = np.asarray(output_layer).copy()
    locations = np.asarray(locations)
    x = np.asarray(x, np.float32)                 # (dim, N)
    xt = x.T                                      # (N, dim)
    x_norm = (xt ** 2).sum(1)[:, None]
    w_norm = (weights ** 2).sum(1)[None, :]
    dist = x_norm + w_norm - 2.0 * xt @ weights.T
    dist = np.where(np.isnan(dist), 0.0, dist)
    dist = np.clip(dist, 0.0, np.inf)
    dists = np.sqrt(dist.sum(0))
    bmu = int(np.argmin(dists))
    bmu_loc = locations[bmu]
    som_trend = int(output_layer[bmu])
    lstm_error = abs(real_trend - lstm_trend)
    som_error = abs(real_trend - som_trend)
    if max(lstm_error, som_error) == 0:
        new_output, update, penalty = lstm_trend, True, -1
    elif max(lstm_error, som_error) > 0 and lstm_error == 0:
        new_output, update, penalty = lstm_trend, False, 1
    elif max(lstm_error, som_error) > 0 and som_error == 0:
        new_output, update, penalty = som_trend, True, 0
    else:
        new_output, update, penalty = real_trend, False, 0
    output_layer[bmu] = new_output
    new_weights = weights.copy()
    if update:
        xc = x[:, -1]
        diff = locations.astype(np.float32) - bmu_loc.astype(np.float32)
        d2 = (diff ** 2).sum(1)
        sigma_op = sigma * beta
        lr = beta * np.exp(-d2 / (sigma_op ** 2))
        new_weights = weights + lr[:, None] * (xc[None, :] - weights)
    return penalty, new_weights, output_layer, bmu, dists


if __name__ == "__main__":
    # SOM: m*n = 256 neurons, dim = 128 features, N = 8 samples, T = 16 fused steps.
    m, n, dim, N, T = 16, 16, 128, 8, 16
    M = m * n
    beta = 0.15
    sigma = max(m, n) / 2.0

    key = jax.random.PRNGKey(0)
    kw, ko, kx, kt1, kt2 = jax.random.split(key, 5)

    weights0 = jax.random.normal(kw, (M, dim), dtype=jnp.float32)       # randn(m*n, dim)
    output_layer0 = jax.random.randint(ko, (M,), 0, 3, dtype=jnp.int32) # .random_(0, 3)
    xs = jax.random.normal(kx, (T, dim, N), dtype=jnp.float32)          # per-step (dim, N)
    lstm_trends = jax.random.randint(kt1, (T,), 0, 3, dtype=jnp.int32)
    real_trends = jax.random.randint(kt2, (T,), 0, 3, dtype=jnp.int32)
    trends = jnp.stack([lstm_trends, real_trends], axis=1)              # (T, 2)

    fwd = jax.jit(functools.partial(som_forward_steps, n=n, beta=beta, sigma=sigma))
    penalties, new_w, new_ol, bmus, dists = fwd(weights0, output_layer0, xs, trends)
    jax.block_until_ready((penalties, new_w, new_ol, bmus, dists))

    # Step-by-step reference (original module semantics).
    locations = np.array([[i, j] for i in range(m) for j in range(n)], dtype=np.int64)
    w_cur = np.asarray(weights0, np.float32).copy()
    ol_cur = np.asarray(output_layer0).copy()
    for t in range(T):
        p_r, w_cur, ol_cur, bmu_r, d_r = ref_forward(
            w_cur, ol_cur, locations, np.asarray(xs[t]),
            int(lstm_trends[t]), int(real_trends[t]), beta, sigma)
        np.testing.assert_allclose(np.asarray(dists[t]), d_r, rtol=2e-3, atol=1e-2)
        assert int(bmus[t]) == bmu_r, (t, int(bmus[t]), bmu_r)
        assert int(penalties[t]) == p_r, (t, int(penalties[t]), p_r)

    np.testing.assert_array_equal(np.asarray(new_ol), ol_cur)
    np.testing.assert_allclose(np.asarray(new_w), w_cur, rtol=1e-3, atol=1e-3)

    print("KERNEL_OK")
</pallas_src>

<mosaic_0001>
module attributes {stable_mosaic.version = 11 : i64} {
  func.func @kernel(%arg0: i32, %arg1: memref<16x2xi32, #tpu.memory_space<smem>>, %arg2: memref<1x8x128xf32, #tpu.memory_space<vmem>>, %arg3: memref<128x256xf32, #tpu.memory_space<vmem>>, %arg4: memref<1x256xi32, #tpu.memory_space<vmem>>, %arg5: memref<128x256xf32, #tpu.memory_space<vmem>>, %arg6: memref<1x256xi32, #tpu.memory_space<vmem>>, %arg7: memref<2x16xi32, #tpu.memory_space<vmem>>, %arg8: memref<1x1x256xf32, #tpu.memory_space<vmem>>) attributes {dimension_semantics = [#tpu.dimension_semantics<arbitrary>], iteration_bounds = array<i64: 16>, scalar_prefetch = 1 : i64, scratch_operands = 0 : i64, tpu.core_type = #tpu.core_type<tc>, window_params = [{transform_indices = @transform_0, window_bounds = array<i64: 1, 8, 128>}, {pipeline_mode = #tpu.pipeline_mode<synchronous>, transform_indices = @transform_1, window_bounds = array<i64: 128, 256>}, {pipeline_mode = #tpu.pipeline_mode<synchronous>, transform_indices = @transform_2, window_bounds = array<i64: 1, 256>}, {pipeline_mode = #tpu.pipeline_mode<synchronous>, transform_indices = @transform_3, window_bounds = array<i64: 128, 256>}, {pipeline_mode = #tpu.pipeline_mode<synchronous>, transform_indices = @transform_4, window_bounds = array<i64: 1, 256>}, {pipeline_mode = #tpu.pipeline_mode<synchronous>, transform_indices = @transform_5, window_bounds = array<i64: 2, 16>}, {transform_indices = @transform_6, window_bounds = array<i64: 1, 1, 256>}]} {
    %c0_i32 = arith.constant 0 : i32
    %0 = arith.cmpi eq, %arg0, %c0_i32 : i32
    %1 = arith.extui %0 : i1 to i32
    %c0_i32_0 = arith.constant 0 : i32
    %2 = arith.cmpi ne, %1, %c0_i32_0 : i32
    scf.if %2 {
      %c0_51 = arith.constant 0 : index
      %c0_52 = arith.constant 0 : index
      %143 = vector.load %arg3[%c0_51, %c0_52] : memref<128x256xf32, #tpu.memory_space<vmem>>, vector<128x256xf32>
      %c0_53 = arith.constant 0 : index
      %c0_54 = arith.constant 0 : index
      %144 = vector.load %arg5[%c0_53, %c0_54] : memref<128x256xf32, #tpu.memory_space<vmem>>, vector<128x256xf32>
      tpu.vector_store %arg5[%c0_53, %c0_54], %143 {strides = array<i32>} : memref<128x256xf32, #tpu.memory_space<vmem>>, vector<128x256xf32>,
      %c0_55 = arith.constant 0 : index
      %c0_56 = arith.constant 0 : index
      %145 = vector.load %arg4[%c0_55, %c0_56] : memref<1x256xi32, #tpu.memory_space<vmem>>, vector<1x256xi32>
      %c0_57 = arith.constant 0 : index
      %c0_58 = arith.constant 0 : index
      %146 = vector.load %arg6[%c0_57, %c0_58] : memref<1x256xi32, #tpu.memory_space<vmem>>, vector<1x256xi32>
      tpu.vector_store %arg6[%c0_57, %c0_58], %145 {strides = array<i32>} : memref<1x256xi32, #tpu.memory_space<vmem>>, vector<1x256xi32>,
      %c0_i32_59 = arith.constant 0 : i32
      %147 = vector.broadcast %c0_i32_59 : i32 to vector<2x16xi32>
      %c0_60 = arith.constant 0 : index
      %c0_61 = arith.constant 0 : index
      %148 = vector.load %arg7[%c0_60, %c0_61] : memref<2x16xi32, #tpu.memory_space<vmem>>, vector<2x16xi32>
      tpu.vector_store %arg7[%c0_60, %c0_61], %147 {strides = array<i32>} : memref<2x16xi32, #tpu.memory_space<vmem>>, vector<2x16xi32>,
    } else {
    }
    %c0 = arith.constant 0 : index
    %c0_1 = arith.constant 0 : index
    %c0_2 = arith.constant 0 : index
    %3 = vector.load %arg2[%c0, %c0_1, %c0_2] : memref<1x8x128xf32, #tpu.memory_space<vmem>>, vector<1x8x128xf32>
    %4 = vector.shape_cast %3 : vector<1x8x128xf32> to vector<8x128xf32>
    %c0_3 = arith.constant 0 : index
    %c0_4 = arith.constant 0 : index
    %5 = vector.load %arg5[%c0_3, %c0_4] : memref<128x256xf32, #tpu.memory_space<vmem>>, vector<128x256xf32>
    %c0_5 = arith.constant 0 : index
    %c0_6 = arith.constant 0 : index
    %6 = vector.load %arg6[%c0_5, %c0_6] : memref<1x256xi32, #tpu.memory_space<vmem>>, vector<1x256xi32>
    %7 = arith.mulf %4, %4 : vector<8x128xf32>
    %cst = arith.constant dense<0.000000e+00> : vector<8xf32>
    %8 = vector.multi_reduction <add>, %7, %cst [1] : vector<8x128xf32> to vector<8xf32>
    %9 = vector.shape_cast %8 : vector<8xf32> to vector<8x1xf32>
    %10 = arith.mulf %5, %5 : vector<128x256xf32>
    %cst_7 = arith.constant dense<0.000000e+00> : vector<256xf32>
    %11 = vector.multi_reduction <add>, %10, %cst_7 [0] : vector<128x256xf32> to vector<256xf32>
    %12 = vector.shape_cast %11 : vector<256xf32> to vector<1x256xf32>
    %cst_8 = arith.constant dense<0.000000e+00> : vector<8x256xf32>
    %13 = tpu.matmul %4, %5, %cst_8 {dimension_numbers = #tpu.dot_dimension_numbers<[1], [0], [0], [1], [0, 0, 1, 1], [], []>, precision = #tpu.contract_precision<fp32>} : vector<8x128xf32>, vector<128x256xf32>, vector<8x256xf32> -> vector<8x256xf32>
    %14 = vector.broadcast %9 : vector<8x1xf32> to vector<8x256xf32>
    %15 = vector.broadcast %12 : vector<1x256xf32> to vector<8x256xf32>
    %16 = arith.addf %14, %15 : vector<8x256xf32>
    %cst_9 = arith.constant 2.000000e+00 : f32
    %17 = vector.broadcast %cst_9 : f32 to vector<8x256xf32>
    %18 = arith.mulf %17, %13 : vector<8x256xf32>
    %19 = arith.subf %16, %18 : vector<8x256xf32>
    %20 = arith.cmpf one, %19, %19 : vector<8x256xf32>
    %cst_10 = arith.constant 0.000000e+00 : f32
    %21 = vector.broadcast %cst_10 : f32 to vector<8x256xf32>
    %22 = arith.select %20, %21, %19 : vector<8x256xi1>, vector<8x256xf32>
    %cst_11 = arith.constant 0.000000e+00 : f32
    %23 = vector.broadcast %cst_11 : f32 to vector<8x256xf32>
    %24 = arith.maximumf %22, %23 : vector<8x256xf32>
    %cst_12 = arith.constant dense<0.000000e+00> : vector<256xf32>
    %25 = vector.multi_reduction <add>, %24, %cst_12 [0] : vector<8x256xf32> to vector<256xf32>
    %26 = vector.shape_cast %25 : vector<256xf32> to vector<1x256xf32>
    %27 = math.sqrt %26 : vector<1x256xf32>
    %c0_13 = arith.constant 0 : index
    %c0_14 = arith.constant 0 : index
    %c0_15 = arith.constant 0 : index
    %28 = vector.load %arg8[%c0_13, %c0_14, %c0_15] : memref<1x1x256xf32, #tpu.memory_space<vmem>>, vector<1x1x256xf32>
    %29 = vector.shape_cast %28 : vector<1x1x256xf32> to vector<1x256xf32>
    %30 = vector.shape_cast %27 : vector<1x256xf32> to vector<1x1x256xf32>
    tpu.vector_store %arg8[%c0_13, %c0_14, %c0_15], %30 {strides = array<i32>} : memref<1x1x256xf32, #tpu.memory_space<vmem>>, vector<1x1x256xf32>,
    %31 = tpu.iota {dimensions = array<i32: 1>} : vector<1x256xi32>
    %32 = arith.sitofp %31 : vector<1x256xi32> to vector<1x256xf32>
    %cst_16 = arith.constant dense<0x7F800000> : vector<1xf32>
    %33 = vector.multi_reduction <minimumf>, %27, %cst_16 [1] : vector<1x256xf32> to vector<1xf32>
    %34 = vector.shape_cast %33 : vector<1xf32> to vector<1x1xf32>
    %35 = vector.broadcast %34 : vector<1x1xf32> to vector<1x256xf32>
    %36 = arith.cmpf oeq, %27, %35 : vector<1x256xf32>
    %cst_17 = arith.constant 2.560000e+02 : f32
    %37 = vector.broadcast %cst_17 : f32 to vector<1x256xf32>
    %38 = arith.select %36, %32, %37 : vector<1x256xi1>, vector<1x256xf32>
    %cst_18 = arith.constant dense<0x7F800000> : vector<1xf32>
    %39 = vector.multi_reduction <minimumf>, %38, %cst_18 [1] : vector<1x256xf32> to vector<1xf32>
    %40 = vector.shape_cast %39 : vector<1xf32> to vector<1x1xf32>
    %41 = vector.broadcast %40 : vector<1x1xf32> to vector<1x256xf32>
    %42 = arith.cmpf oeq, %32, %41 : vector<1x256xf32>
    %43 = arith.fptosi %40 : vector<1x1xf32> to vector<1x1xi32>
    %44 = arith.index_cast %arg0 : i32 to index
    %c0_19 = arith.constant 0 : index
    %45 = memref.load %arg1[%44, %c0_19] : memref<16x2xi32, #tpu.memory_space<smem>>
    %46 = arith.index_cast %arg0 : i32 to index
    %c1 = arith.constant 1 : index
    %47 = memref.load %arg1[%46, %c1] : memref<16x2xi32, #tpu.memory_space<smem>>
    %48 = arith.sitofp %6 : vector<1x256xi32> to vector<1x256xf32>
    %cst_20 = arith.constant 0.000000e+00 : f32
    %49 = vector.broadcast %cst_20 : f32 to vector<1x256xf32>
    %50 = arith.select %42, %48, %49 : vector<1x256xi1>, vector<1x256xf32>
    %cst_21 = arith.constant dense<0.000000e+00> : vector<1xf32>
    %51 = vector.multi_reduction <add>, %50, %cst_21 [1] : vector<1x256xf32> to vector<1xf32>
    %52 = vector.shape_cast %51 : vector<1xf32> to vector<1x1xf32>
    %53 = arith.fptosi %52 : vector<1x1xf32> to vector<1x1xi32>
    %54 = arith.subi %47, %45 : i32
    %c0_i32_22 = arith.constant 0 : i32
    %55 = arith.subi %c0_i32_22, %54 : i32
    %56 = arith.maxsi %54, %55 : i32
    %57 = vector.broadcast %47 : i32 to vector<1x1xi32>
    %58 = arith.subi %57, %53 : vector<1x1xi32>
    %c0_i32_23 = arith.constant 0 : i32
    %59 = vector.broadcast %c0_i32_23 : i32 to vector<1x1xi32>
    %60 = arith.subi %59, %58 : vector<1x1xi32>
    %61 = arith.maxsi %58, %60 : vector<1x1xi32>
    %62 = vector.broadcast %56 : i32 to vector<1x1xi32>
    %63 = arith.maxsi %62, %61 : vector<1x1xi32>
    %c0_i32_24 = arith.constant 0 : i32
    %64 = vector.broadcast %c0_i32_24 : i32 to vector<1x1xi32>
    %65 = arith.cmpi eq, %63, %64 : vector<1x1xi32>
    %c0_i32_25 = arith.constant 0 : i32
    %66 = vector.broadcast %c0_i32_25 : i32 to vector<1x1xi32>
    %67 = arith.cmpi sgt, %63, %66 : vector<1x1xi32>
    %c0_i32_26 = arith.constant 0 : i32
    %68 = arith.cmpi eq, %56, %c0_i32_26 : i32
    %69 = vector.broadcast %68 : i1 to vector<1x1xi1>
    %70 = arith.andi %67, %69 : vector<1x1xi1>
    %c0_i32_27 = arith.constant 0 : i32
    %71 = vector.broadcast %c0_i32_27 : i32 to vector<1x1xi32>
    %72 = arith.cmpi sgt, %63, %71 : vector<1x1xi32>
    %c0_i32_28 = arith.constant 0 : i32
    %73 = vector.broadcast %c0_i32_28 : i32 to vector<1x1xi32>
    %74 = arith.cmpi eq, %61, %73 : vector<1x1xi32>
    %75 = arith.andi %72, %74 : vector<1x1xi1>
    %c1_i32 = arith.constant 1 : i32
    %c0_i32_29 = arith.constant 0 : i32
    %76 = vector.broadcast %c1_i32 : i32 to vector<1x1xi32>
    %77 = vector.broadcast %c0_i32_29 : i32 to vector<1x1xi32>
    %78 = arith.select %70, %76, %77 : vector<1x1xi1>, vector<1x1xi32>
    %c-1_i32 = arith.constant -1 : i32
    %79 = vector.broadcast %c-1_i32 : i32 to vector<1x1xi32>
    %80 = arith.select %65, %79, %78 : vector<1x1xi1>, vector<1x1xi32>
    %81 = arith.ori %65, %70 : vector<1x1xi1>
    %82 = vector.broadcast %47 : i32 to vector<1x1xi32>
    %83 = arith.select %75, %53, %82 : vector<1x1xi1>, vector<1x1xi32>
    %84 = vector.broadcast %45 : i32 to vector<1x1xi32>
    %85 = arith.select %81, %84, %83 : vector<1x1xi1>, vector<1x1xi32>
    %86 = arith.ori %65, %75 : vector<1x1xi1>
    %cst_30 = arith.constant 1.000000e+00 : f32
    %cst_31 = arith.constant 0.000000e+00 : f32
    %87 = vector.broadcast %cst_30 : f32 to vector<1x1xf32>
    %88 = vector.broadcast %cst_31 : f32 to vector<1x1xf32>
    %89 = arith.select %86, %87, %88 : vector<1x1xi1>, vector<1x1xf32>
    %90 = vector.shape_cast %85 : vector<1x1xi32> to vector<1x1xi32>
    %91 = vector.broadcast %90 : vector<1x1xi32> to vector<1x256xi32>
    %92 = arith.select %42, %91, %6 : vector<1x256xi1>, vector<1x256xi32>
    %c0_32 = arith.constant 0 : index
    %c0_33 = arith.constant 0 : index
    %93 = vector.load %arg6[%c0_32, %c0_33] : memref<1x256xi32, #tpu.memory_space<vmem>>, vector<1x256xi32>
    tpu.vector_store %arg6[%c0_32, %c0_33], %92 {strides = array<i32>} : memref<1x256xi32, #tpu.memory_space<vmem>>, vector<1x256xi32>,
    %94 = tpu.iota {dimensions = array<i32: 1>} : vector<1x16xi32>
    %95 = vector.broadcast %arg0 : i32 to vector<1x16xi32>
    %96 = arith.cmpi eq, %94, %95 : vector<1x16xi32>
    %c0_34 = arith.constant 0 : index
    %c0_35 = arith.constant 0 : index
    %97 = vector.load %arg7[%c0_34, %c0_35] : memref<2x16xi32, #tpu.memory_space<vmem>>, vector<1x16xi32>
    %98 = vector.shape_cast %80 : vector<1x1xi32> to vector<1x1xi32>
    %99 = vector.broadcast %98 : vector<1x1xi32> to vector<1x16xi32>
    %100 = arith.select %96, %99, %97 : vector<1x16xi1>, vector<1x16xi32>
    %c0_36 = arith.constant 0 : index
    %c0_37 = arith.constant 0 : index
    %101 = vector.load %arg7[%c0_36, %c0_37] : memref<2x16xi32, #tpu.memory_space<vmem>>, vector<1x16xi32>
    tpu.vector_store %arg7[%c0_36, %c0_37], %100 {strides = array<i32>} : memref<2x16xi32, #tpu.memory_space<vmem>>, vector<1x16xi32>,
    %c1_38 = arith.constant 1 : index
    %c0_39 = arith.constant 0 : index
    %102 = vector.load %arg7[%c1_38, %c0_39] : memref<2x16xi32, #tpu.memory_space<vmem>>, vector<1x16xi32>
    %103 = vector.shape_cast %43 : vector<1x1xi32> to vector<1x1xi32>
    %104 = vector.broadcast %103 : vector<1x1xi32> to vector<1x16xi32>
    %105 = arith.select %96, %104, %102 : vector<1x16xi1>, vector<1x16xi32>
    %c1_40 = arith.constant 1 : index
    %c0_41 = arith.constant 0 : index
    %106 = vector.load %arg7[%c1_40, %c0_41] : memref<2x16xi32, #tpu.memory_space<vmem>>, vector<1x16xi32>
    tpu.vector_store %arg7[%c1_40, %c0_41], %105 {strides = array<i32>} : memref<2x16xi32, #tpu.memory_space<vmem>>, vector<1x16xi32>,
    %cst_42 = arith.constant 1.600000e+01 : f32
    %107 = vector.broadcast %cst_42 : f32 to vector<1x256xf32>
    %108 = arith.divf %32, %107 : vector<1x256xf32>
    %109 = math.floor %108 : vector<1x256xf32>
    %cst_43 = arith.constant 1.600000e+01 : f32
    %110 = vector.broadcast %cst_43 : f32 to vector<1x256xf32>
    %111 = arith.mulf %109, %110 : vector<1x256xf32>
    %112 = arith.subf %32, %111 : vector<1x256xf32>
    %cst_44 = arith.constant 1.600000e+01 : f32
    %113 = vector.broadcast %cst_44 : f32 to vector<1x1xf32>
    %114 = arith.divf %40, %113 : vector<1x1xf32>
    %115 = math.floor %114 : vector<1x1xf32>
    %cst_45 = arith.constant 1.600000e+01 : f32
    %116 = vector.broadcast %cst_45 : f32 to vector<1x1xf32>
    %117 = arith.mulf %115, %116 : vector<1x1xf32>
    %118 = arith.subf %40, %117 : vector<1x1xf32>
    %119 = vector.broadcast %115 : vector<1x1xf32> to vector<1x256xf32>
    %120 = arith.subf %109, %119 : vector<1x256xf32>
    %121 = vector.broadcast %118 : vector<1x1xf32> to vector<1x256xf32>
    %122 = arith.subf %112, %121 : vector<1x256xf32>
    %123 = arith.mulf %120, %120 : vector<1x256xf32>
    %124 = arith.mulf %122, %122 : vector<1x256xf32>
    %125 = arith.addf %123, %124 : vector<1x256xf32>
    %cst_46 = arith.constant 0.000000e+00 : f32
    %126 = vector.broadcast %cst_46 : f32 to vector<1x256xf32>
    %127 = arith.subf %126, %125 : vector<1x256xf32>
    %cst_47 = arith.constant 0.694444418 : f32
    %128 = vector.broadcast %cst_47 : f32 to vector<1x256xf32>
    %129 = arith.mulf %127, %128 : vector<1x256xf32>
    %130 = math.exp %129 : vector<1x256xf32>
    %cst_48 = arith.constant 1.500000e-01 : f32
    %131 = vector.broadcast %cst_48 : f32 to vector<1x256xf32>
    %132 = arith.mulf %131, %130 : vector<1x256xf32>
    %133 = vector.broadcast %89 : vector<1x1xf32> to vector<1x256xf32>
    %134 = arith.mulf %132, %133 : vector<1x256xf32>
    %135 = tpu.transpose %4, [1, 0] : vector<8x128xf32> -> vector<128x8xf32>
    %136 = vector.extract_strided_slice %135 {offsets = [0, 7], sizes = [128, 1], strides = [1, 1]} : vector<128x8xf32> to vector<128x1xf32>
    %137 = vector.broadcast %136 : vector<128x1xf32> to vector<128x256xf32>
    %138 = arith.subf %137, %5 : vector<128x256xf32>
    %139 = vector.broadcast %134 : vector<1x256xf32> to vector<128x256xf32>
    %140 = arith.mulf %139, %138 : vector<128x256xf32>
    %141 = arith.addf %5, %140 : vector<128x256xf32>
    %c0_49 = arith.constant 0 : index
    %c0_50 = arith.constant 0 : index
    %142 = vector.load %arg5[%c0_49, %c0_50] : memref<128x256xf32, #tpu.memory_space<vmem>>, vector<128x256xf32>
    tpu.vector_store %arg5[%c0_49, %c0_50], %141 {strides = array<i32>} : memref<128x256xf32, #tpu.memory_space<vmem>>, vector<128x256xf32>,
    return
  }
  func.func @transform_0(%arg0: i32, %arg1: memref<16x2xi32, #tpu.memory_space<smem>>) -> (i32, i32, i32) {
    %c0_i32 = arith.constant 0 : i32
    %c0_i32_0 = arith.constant 0 : i32
    %c0_i32_1 = arith.constant 0 : i32
    return %arg0, %c0_i32, %c0_i32_0 : i32, i32, i32
  }
  func.func @transform_1(%arg0: i32, %arg1: memref<16x2xi32, #tpu.memory_space<smem>>) -> (i32, i32) {
    %c0_i32 = arith.constant 0 : i32
    %c0_i32_0 = arith.constant 0 : i32
    %c0_i32_1 = arith.constant 0 : i32
    return %c0_i32, %c0_i32_0 : i32, i32
  }
  func.func @transform_2(%arg0: i32, %arg1: memref<16x2xi32, #tpu.memory_space<smem>>) -> (i32, i32) {
    %c0_i32 = arith.constant 0 : i32
    %c0_i32_0 = arith.constant 0 : i32
    %c0_i32_1 = arith.constant 0 : i32
    return %c0_i32, %c0_i32_0 : i32, i32
  }
  func.func @transform_3(%arg0: i32, %arg1: memref<16x2xi32, #tpu.memory_space<smem>>) -> (i32, i32) {
    %c0_i32 = arith.constant 0 : i32
    %c0_i32_0 = arith.constant 0 : i32
    %c0_i32_1 = arith.constant 0 : i32
    return %c0_i32, %c0_i32_0 : i32, i32
  }
  func.func @transform_4(%arg0: i32, %arg1: memref<16x2xi32, #tpu.memory_space<smem>>) -> (i32, i32) {
    %c0_i32 = arith.constant 0 : i32
    %c0_i32_0 = arith.constant 0 : i32
    %c0_i32_1 = arith.constant 0 : i32
    return %c0_i32, %c0_i32_0 : i32, i32
  }
  func.func @transform_5(%arg0: i32, %arg1: memref<16x2xi32, #tpu.memory_space<smem>>) -> (i32, i32) {
    %c0_i32 = arith.constant 0 : i32
    %c0_i32_0 = arith.constant 0 : i32
    %c0_i32_1 = arith.constant 0 : i32
    return %c0_i32, %c0_i32_0 : i32, i32
  }
  func.func @transform_6(%arg0: i32, %arg1: memref<16x2xi32, #tpu.memory_space<smem>>) -> (i32, i32, i32) {
    %c0_i32 = arith.constant 0 : i32
    %c0_i32_0 = arith.constant 0 : i32
    %c0_i32_1 = arith.constant 0 : i32
    return %arg0, %c0_i32, %c0_i32_0 : i32, i32, i32
  }
}

</mosaic_0001>

<llo_original>
// kernel: som_forward_steps.1
$region0: #{som_forward_steps.1}
  #allocation0 [shape = 'u32[]', space=smem, size = 0x4, offset = 0x4, fixed_abs, tag = 'smem constant byte address 0x4 - core index']
  #allocation1 [shape = 'u32[72,128]{1,0:T(1,128)}', space=vmem, size = 0x9000, scoped, tag = 'internal scratch']
  #allocation2 [shape = 's32[1]{0}', space=sflag, size = 0x4, scoped, tag = 'scoped memory for som_forward_steps.1']
  #allocation3 [shape = 'u8[8192]{0}', space=smem, size = 0x2000, scoped, tag = 'prefetched SMEM operand 0']
  %s0 = inlined_call_operand.vmem [shape: s32[16,2], index: 0, kind: input, shape index: {}]
  %s1 = inlined_call_operand.vmem [shape: f32[16,8,128], index: 1, kind: input, shape index: {}]
  %s2 = inlined_call_operand.vmem [shape: f32[128,256], index: 2, kind: input, shape index: {}, may-alias: {2,4}]
  %s3 = inlined_call_operand.vmem [shape: s32[1,256], index: 3, kind: input, shape index: {}, may-alias: {3,5}]
  %s4 = inlined_call_operand.vmem [shape: f32[128,256], index: 4, kind: output, shape index: {0}, may-alias: {2,4}]
  %s5 = inlined_call_operand.vmem [shape: s32[1,256], index: 5, kind: output, shape index: {1}, may-alias: {3,5}]
  %s6 = inlined_call_operand.vmem [shape: s32[2,16], index: 6, kind: output, shape index: {2}]
  %s7 = inlined_call_operand.vmem [shape: f32[16,1,256], index: 7, kind: output, shape index: {3}]
  %8 = xla_tuple %s4, %s5, %s6, %s7
  %s9 = sld [smem:[#allocation0]]
  $region73: #{som_forward_steps.1} parent=0
    _
  %s11 = ssub.s32 1, %s9
  %s12 = scalar_select 0, %s11, %s9
  %s14 = sshll.u32 %s0, 4
  %s15 = int_to_ptr.vmem [resolvable:$true] %s14
  %17 = dma.vmem_to_smem %s15, 256, [#allocation3], [#allocation2]
  %19 = dma.done [#allocation2], 256
  %20 = sfence
  loop: start=0, step=1, limit=18
  $region2: #{som_forward_steps.1} parent=0 // loop_pre_header
    _
  $region3: #{som_forward_steps.1} parent=0 // loop_header
    %s22 = sphi 0, %s26
    %p23 = scmp.ge.s32.totalorder %s22, 18
    %s32 = sphi 0, %s34
    %s35 = sphi 0, %s32
    %s36 = sphi 0, %s35
    %s52 = sphi 0, %s36
    %s56 = sphi 0, %s56
    %s58 = sphi 0, %s56
    %s59 = sphi 0, %s58
    %s73 = sphi 0, %s59
    %s77 = sphi 0, %s77
    %s79 = sphi 0, %s77
    %s80 = sphi 0, %s79
    %s94 = sphi 0, %s80
    %s98 = sphi 0, %s98
    %s100 = sphi 0, %s98
    %s101 = sphi 0, %s100
    %s115 = sphi 0, %s101
    %s119 = sphi 0, %s119
    %s121 = sphi 0, %s119
    %s122 = sphi 0, %s121
    %s136 = sphi 0, %s122
    %s140 = sphi 0, %s140
    %s142 = sphi 0, %s140
    %s143 = sphi 0, %s142
    %s157 = sphi 0, %s143
    %s163 = sphi 0, %s165
    %s166 = sphi 0, %s163
    %s167 = sphi 0, %s166
    %s183 = sphi 0, %s167
  $region4: #{som_forward_steps.1} parent=0 // loop_header_branch
    %25 = sbr.rel (%p23) target = $region8
  $region5: #{som_forward_steps.1} parent=0 // loop_body
    %s27 = ssub.s32 %s22, 1
    %s28 = ssub.s32 %s22, 2
    %s29 = sadd.s32 %s22, 1
    %s30 = ssub.s32 %s22, %s29
    %p31 = scmp.eq.s32.totalorder %s30, 0
    %s33 = sadd.s32 %s32, 1
    %s34 = scalar_select %p31, %s32, %s33
    %p37 = pneg %p31
    %p38 = scmp.eq.s32.totalorder %s22, 15
    %p39 = por %p37, %p38
    %p40 = scmp.ne.s32.totalorder %s32, %s35
    %p41 = scmp.eq.s32.totalorder %s22, 0
    %p42 = por %p40, %p41
    %p43 = scmp.ne.s32.totalorder %s32, %s35
    %p44 = scmp.eq.s32.totalorder %s27, 15
    %p45 = por %p43, %p44
    %p46 = scmp.ne.s32.totalorder %s35, %s36
    %p47 = scmp.eq.s32.totalorder %s27, 0
    %p48 = por %p46, %p47
    %p49 = scmp.ne.s32.totalorder %s35, %s36
    %p50 = scmp.eq.s32.totalorder %s28, 15
    %p51 = por %p49, %p50
    %p53 = scmp.ne.s32.totalorder %s36, %s52
    %p54 = scmp.eq.s32.totalorder %s28, 0
    %p55 = por %p53, %p54
    %s57 = sadd.s32 %s56, 1
    %p60 = scmp.eq.s32.totalorder %s22, 15
    %p61 = scmp.ne.s32.totalorder %s56, %s58
    %p62 = scmp.eq.s32.totalorder %s22, 0
    %p63 = por %p61, %p62
    %p64 = scmp.ne.s32.totalorder %s56, %s58
    %p65 = scmp.eq.s32.totalorder %s27, 15
    %p66 = por %p64, %p65
    %p67 = scmp.ne.s32.totalorder %s58, %s59
    %p68 = scmp.eq.s32.totalorder %s27, 0
    %p69 = por %p67, %p68
    %p70 = scmp.ne.s32.totalorder %s58, %s59
    %p71 = scmp.eq.s32.totalorder %s28, 15
    %p72 = por %p70, %p71
    %p74 = scmp.ne.s32.totalorder %s59, %s73
    %p75 = scmp.eq.s32.totalorder %s28, 0
    %p76 = por %p74, %p75
    %s78 = sadd.s32 %s77, 1
    %p81 = scmp.eq.s32.totalorder %s22, 15
    %p82 = scmp.ne.s32.totalorder %s77, %s79
    %p83 = scmp.eq.s32.totalorder %s22, 0
    %p84 = por %p82, %p83
    %p85 = scmp.ne.s32.totalorder %s77, %s79
    %p86 = scmp.eq.s32.totalorder %s27, 15
    %p87 = por %p85, %p86
    %p88 = scmp.ne.s32.totalorder %s79, %s80
    %p89 = scmp.eq.s32.totalorder %s27, 0
    %p90 = por %p88, %p89
    %p91 = scmp.ne.s32.totalorder %s79, %s80
    %p92 = scmp.eq.s32.totalorder %s28, 15
    %p93 = por %p91, %p92
    %p95 = scmp.ne.s32.totalorder %s80, %s94
    %p96 = scmp.eq.s32.totalorder %s28, 0
    %p97 = por %p95, %p96
    %s99 = sadd.s32 %s98, 1
    %p102 = scmp.eq.s32.totalorder %s22, 15
    %p103 = scmp.ne.s32.totalorder %s98, %s100
    %p104 = scmp.eq.s32.totalorder %s22, 0
    %p105 = por %p103, %p104
    %p106 = scmp.ne.s32.totalorder %s98, %s100
    %p107 = scmp.eq.s32.totalorder %s27, 15
    %p108 = por %p106, %p107
    %p109 = scmp.ne.s32.totalorder %s100, %s101
    %p110 = scmp.eq.s32.totalorder %s27, 0
    %p111 = por %p109, %p110
    %p112 = scmp.ne.s32.totalorder %s100, %s101
    %p113 = scmp.eq.s32.totalorder %s28, 15
    %p114 = por %p112, %p113
    %p116 = scmp.ne.s32.totalorder %s101, %s115
    %p117 = scmp.eq.s32.totalorder %s28, 0
    %p118 = por %p116, %p117
    %s120 = sadd.s32 %s119, 1
    %p123 = scmp.eq.s32.totalorder %s22, 15
    %p124 = scmp.ne.s32.totalorder %s119, %s121
    %p125 = scmp.eq.s32.totalorder %s22, 0
    %p126 = por %p124, %p125
    %p127 = scmp.ne.s32.totalorder %s119, %s121
    %p128 = scmp.eq.s32.totalorder %s27, 15
    %p129 = por %p127, %p128
    %p130 = scmp.ne.s32.totalorder %s121, %s122
    %p131 = scmp.eq.s32.totalorder %s27, 0
    %p132 = por %p130, %p131
    %p133 = scmp.ne.s32.totalorder %s121, %s122
    %p134 = scmp.eq.s32.totalorder %s28, 15
    %p135 = por %p133, %p134
    %p137 = scmp.ne.s32.totalorder %s122, %s136
    %p138 = scmp.eq.s32.totalorder %s28, 0
    %p139 = por %p137, %p138
    %s141 = sadd.s32 %s140, 1
    %p144 = scmp.eq.s32.totalorder %s22, 15
    %p145 = scmp.ne.s32.totalorder %s140, %s142
    %p146 = scmp.eq.s32.totalorder %s22, 0
    %p147 = por %p145, %p146
    %p148 = scmp.ne.s32.totalorder %s140, %s142
    %p149 = scmp.eq.s32.totalorder %s27, 15
    %p150 = por %p148, %p149
    %p151 = scmp.ne.s32.totalorder %s142, %s143
    %p152 = scmp.eq.s32.totalorder %s27, 0
    %p153 = por %p151, %p152
    %p154 = scmp.ne.s32.totalorder %s142, %s143
    %p155 = scmp.eq.s32.totalorder %s28, 15
    %p156 = por %p154, %p155
    %p158 = scmp.ne.s32.totalorder %s143, %s157
    %p159 = scmp.eq.s32.totalorder %s28, 0
    %p160 = por %p158, %p159
    %s161 = ssub.s32 %s22, %s29
    %p162 = scmp.eq.s32.totalorder %s161, 0
    %s164 = sadd.s32 %s163, 1
    %s165 = scalar_select %p162, %s163, %s164
    %p168 = pneg %p162
    %p169 = scmp.eq.s32.totalorder %s22, 15
    %p170 = por %p168, %p169
    %p171 = scmp.ne.s32.totalorder %s163, %s166
    %p172 = scmp.eq.s32.totalorder %s22, 0
    %p173 = por %p171, %p172
    %p174 = scmp.ne.s32.totalorder %s163, %s166
    %p175 = scmp.eq.s32.totalorder %s27, 15
    %p176 = por %p174, %p175
    %p177 = scmp.ne.s32.totalorder %s166, %s167
    %p178 = scmp.eq.s32.totalorder %s27, 0
    %p179 = por %p177, %p178
    %p180 = scmp.ne.s32.totalorder %s166, %s167
    %p181 = scmp.eq.s32.totalorder %s28, 15
    %p182 = por %p180, %p181
    %p184 = scmp.ne.s32.totalorder %s167, %s183
    %p185 = scmp.eq.s32.totalorder %s28, 0
    %p186 = por %p184, %p185
    %p187 = scmp.le.s32.totalorder 1, %s22
    %p188 = scmp.lt.s32.totalorder %s22, 17
    %p189 = pnand %p187, %p188
    %p190 = pneg %p189
    // Predicated region
    $region9: #{som_forward_steps.1} parent=5 // pred_check
      _
    $region10: #{som_forward_steps.1} parent=5 // pred_check_branch
      %192 = sbr.rel (%p189) target = $region12
    $region11: #{som_forward_steps.1} parent=5 // pred_region
      %s193 = ssub.s32 %s22, 1
      // Predicated region
      $region13: #{som_forward_steps.1} parent=11 // pred_check
        %p194 = pneg %p69
      $region14: #{som_forward_steps.1} parent=11 // pred_check_branch
        %196 = sbr.rel (%p194) target = $region16
      $region15: #{som_forward_steps.1} parent=11 // pred_region
        _
      $region16: #{som_forward_steps.1} parent=11 // pred_fallthru
        _
      // Predicated region
      $region17: #{som_forward_steps.1} parent=11 // pred_check
        %p197 = pneg %p90
      $region18: #{som_forward_steps.1} parent=11 // pred_check_branch
        %199 = sbr.rel (%p197) target = $region20
      $region19: #{som_forward_steps.1} parent=11 // pred_region
        _
      $region20: #{som_forward_steps.1} parent=11 // pred_fallthru
        _
    $region12: #{som_forward_steps.1} parent=5 // pred_fallthru
      _
    %p200 = scmp.lt.s32.totalorder %s22, 16
    // Predicated region
    $region21: #{som_forward_steps.1} parent=5 // pred_check
      %p201 = pneg %p200
    $region22: #{som_forward_steps.1} parent=5 // pred_check_branch
      %203 = sbr.rel (%p201) target = $region24
    $region23: #{som_forward_steps.1} parent=5 // pred_region
      // Predicated region
      $region25: #{som_forward_steps.1} parent=23 // pred_check
        %p204 = pneg %p42
      $region26: #{som_forward_steps.1} parent=23 // pred_check_branch
        %206 = sbr.rel (%p204) target = $region28
      $region27: #{som_forward_steps.1} parent=23 // pred_region
        %p207 = scmp.lt.s32.totalorder %s22, 15
        %s208 = scalar_select %p207, %s22, 15
        %s209 = smul.addr %s208, 8
        %s210 = scalar_lea.vmem %s1, %s209
      $region28: #{som_forward_steps.1} parent=23 // pred_fallthru
        _
    $region24: #{som_forward_steps.1} parent=5 // pred_fallthru
      _
    %p211 = scmp.le.s32.totalorder 1, %s22
    %p212 = scmp.lt.s32.totalorder %s22, 17
    %p213 = pnand %p211, %p212
    %p214 = pneg %p213
    // Predicated region
    $region29: #{som_forward_steps.1} parent=5 // pred_check
      _
    $region30: #{som_forward_steps.1} parent=5 // pred_check_branch
      %216 = sbr.rel (%p213) target = $region32
    $region31: #{som_forward_steps.1} parent=5 // pred_region
      %s217 = ssub.s32 %s22, 1
      %p218 = scmp.lt.s32.totalorder %s27, 15
      %s219 = scalar_select %p218, %s27, 15
      %s220 = smul.addr %s219, 8
      %s221 = scalar_lea.vmem %s1, %s220
      %p222 = pneg %p48
      %p223 = pneg %p45
      %p224 = pneg %p69
      %p225 = pneg %p66
      %p226 = pneg %p90
      %p227 = pneg %p87
      %p228 = pneg %p111
      %p229 = pneg %p108
      %p230 = pneg %p132
      %p231 = pneg %p129
      %p232 = pneg %p153
      %p233 = pneg %p150
      %p234 = pneg %p179
      %p235 = pneg %p176
      %p236 = scmp.lt.s32.totalorder %s27, 15
      %s237 = scalar_select %p236, %s27, 15
      %s238 = smul.addr %s237, 2
      %s239 = scalar_lea.vmem %s7, %s238
      %p240 = scmp.lt.s32.totalorder %s27, 15
      %s241 = scalar_select %p240, %s27, 15
      %s242 = smul.addr %s241, 8
      %s243 = scalar_lea.vmem %s1, %s242
      %p244 = scmp.lt.s32.totalorder %s27, 15
      %s245 = scalar_select %p244, %s27, 15
      %s246 = smul.addr %s245, 2
      %s247 = scalar_lea.vmem %s7, %s246
      %p248 = scmp.eq.s32.totalorder %s27, 0
      // Predicated region
      $region33: #{som_forward_steps.1} parent=31 // pred_check
        %p249 = pneg %p248
      $region34: #{som_forward_steps.1} parent=31 // pred_check_branch
        %251 = sbr.rel (%p249) target = $region36
      $region35: #{som_forward_steps.1} parent=31 // pred_region
        %v252 = vld [vmem:[%s2] sm:$0xff]
        %v253 = vld [vmem:[%s2 + $0x8] sm:$0xff]
        %v254 = vld [vmem:[%s2 + $0x10] sm:$0xff]
        %v255 = vld [vmem:[%s2 + $0x18] sm:$0xff]
        %v256 = vld [vmem:[%s2 + $0x20] sm:$0xff]
        %v257 = vld [vmem:[%s2 + $0x28] sm:$0xff]
        %v258 = vld [vmem:[%s2 + $0x30] sm:$0xff]
        %v259 = vld [vmem:[%s2 + $0x38] sm:$0xff]
        %v260 = vld [vmem:[%s2 + $0x40] sm:$0xff]
        %v261 = vld [vmem:[%s2 + $0x48] sm:$0xff]
        %v262 = vld [vmem:[%s2 + $0x50] sm:$0xff]
        %v263 = vld [vmem:[%s2 + $0x58] sm:$0xff]
        %v264 = vld [vmem:[%s2 + $0x60] sm:$0xff]
        %v265 = vld [vmem:[%s2 + $0x68] sm:$0xff]
        %v266 = vld [vmem:[%s2 + $0x70] sm:$0xff]
        %v267 = vld [vmem:[%s2 + $0x78] sm:$0xff]
        %v268 = vld [vmem:[%s2 + $0x80] sm:$0xff]
        %v269 = vld [vmem:[%s2 + $0x88] sm:$0xff]
        %v270 = vld [vmem:[%s2 + $0x90] sm:$0xff]
        %v271 = vld [vmem:[%s2 + $0x98] sm:$0xff]
        %v272 = vld [vmem:[%s2 + $0xa0] sm:$0xff]
        %v273 = vld [vmem:[%s2 + $0xa8] sm:$0xff]
        %v274 = vld [vmem:[%s2 + $0xb0] sm:$0xff]
        %v275 = vld [vmem:[%s2 + $0xb8] sm:$0xff]
        %v276 = vld [vmem:[%s2 + $0xc0] sm:$0xff]
        %v277 = vld [vmem:[%s2 + $0xc8] sm:$0xff]
        %v278 = vld [vmem:[%s2 + $0xd0] sm:$0xff]
        %v279 = vld [vmem:[%s2 + $0xd8] sm:$0xff]
        %v280 = vld [vmem:[%s2 + $0xe0] sm:$0xff]
        %v281 = vld [vmem:[%s2 + $0xe8] sm:$0xff]
        %v282 = vld [vmem:[%s2 + $0xf0] sm:$0xff]
        %v283 = vld [vmem:[%s2 + $0xf8] sm:$0xff]
        %284 = vst [vmem:[%s4] sm:$0xff] %v252
        %285 = vst [vmem:[%s4 + $0x8] sm:$0xff] %v253
        %286 = vst [vmem:[%s4 + $0x10] sm:$0xff] %v254
        %287 = vst [vmem:[%s4 + $0x18] sm:$0xff] %v255
        %288 = vst [vmem:[%s4 + $0x20] sm:$0xff] %v256
        %289 = vst [vmem:[%s4 + $0x28] sm:$0xff] %v257
        %290 = vst [vmem:[%s4 + $0x30] sm:$0xff] %v258
        %291 = vst [vmem:[%s4 + $0x38] sm:$0xff] %v259
        %292 = vst [vmem:[%s4 + $0x40] sm:$0xff] %v260
        %293 = vst [vmem:[%s4 + $0x48] sm:$0xff] %v261
        %294 = vst [vmem:[%s4 + $0x50] sm:$0xff] %v262
        %295 = vst [vmem:[%s4 + $0x58] sm:$0xff] %v263
        %296 = vst [vmem:[%s4 + $0x60] sm:$0xff] %v264
        %297 = vst [vmem:[%s4 + $0x68] sm:$0xff] %v265
        %298 = vst [vmem:[%s4 + $0x70] sm:$0xff] %v266
        %299 = vst [vmem:[%s4 + $0x78] sm:$0xff] %v267
        %300 = vst [vmem:[%s4 + $0x80] sm:$0xff] %v268
        %301 = vst [vmem:[%s4 + $0x88] sm:$0xff] %v269
        %302 = vst [vmem:[%s4 + $0x90] sm:$0xff] %v270
        %303 = vst [vmem:[%s4 + $0x98] sm:$0xff] %v271
        %304 = vst [vmem:[%s4 + $0xa0] sm:$0xff] %v272
        %305 = vst [vmem:[%s4 + $0xa8] sm:$0xff] %v273
        %306 = vst [vmem:[%s4 + $0xb0] sm:$0xff] %v274
        %307 = vst [vmem:[%s4 + $0xb8] sm:$0xff] %v275
        %308 = vst [vmem:[%s4 + $0xc0] sm:$0xff] %v276
        %309 = vst [vmem:[%s4 + $0xc8] sm:$0xff] %v277
        %310 = vst [vmem:[%s4 + $0xd0] sm:$0xff] %v278
        %311 = vst [vmem:[%s4 + $0xd8] sm:$0xff] %v279
        %312 = vst [vmem:[%s4 + $0xe0] sm:$0xff] %v280
        %313 = vst [vmem:[%s4 + $0xe8] sm:$0xff] %v281
        %314 = vst [vmem:[%s4 + $0xf0] sm:$0xff] %v282
        %315 = vst [vmem:[%s4 + $0xf8] sm:$0xff] %v283
        %v316 = vld [vmem:[%s3] sm:$0x3]
        %v317 = vlaneseq
        %vm318 = vcmp.ge.s32.totalorder %v317, 0
        %vm319 = vcmp.lt.s32.totalorder %v317, 256
        %vm320 = vmand %vm318, %vm319
        %321 = vst.msk [vmem:[%s5] sm:$0x3] %vm320, %v316
        %vm322 = vcmask 123904
        %323 = vst.msk [vmem:[%s6] sm:$0x3] %vm322, 0
      $region36: #{som_forward_steps.1} parent=31 // pred_fallthru
        _
      %v324 = vld [vmem:[%s243] sm:$0xff]
      %v325 = vld [vmem:[%s4] sm:$0xff]
      %v326 = vld [vmem:[%s4 + $0x8] sm:$0xff]
      %v327 = vld [vmem:[%s4 + $0x10] sm:$0xff]
      %v328 = vld [vmem:[%s4 + $0x18] sm:$0xff]
      %v329 = vld [vmem:[%s4 + $0x20] sm:$0xff]
      %v330 = vld [vmem:[%s4 + $0x28] sm:$0xff]
      %v331 = vld [vmem:[%s4 + $0x30] sm:$0xff]
      %v332 = vld [vmem:[%s4 + $0x38] sm:$0xff]
      %v333 = vld [vmem:[%s4 + $0x40] sm:$0xff]
      %v334 = vld [vmem:[%s4 + $0x48] sm:$0xff]
      %v335 = vld [vmem:[%s4 + $0x50] sm:$0xff]
      %v336 = vld [vmem:[%s4 + $0x58] sm:$0xff]
      %v337 = vld [vmem:[%s4 + $0x60] sm:$0xff]
      %v338 = vld [vmem:[%s4 + $0x68] sm:$0xff]
      %v339 = vld [vmem:[%s4 + $0x70] sm:$0xff]
      %v340 = vld [vmem:[%s4 + $0x78] sm:$0xff]
      %v341 = vld [vmem:[%s4 + $0x80] sm:$0xff]
      %v342 = vld [vmem:[%s4 + $0x88] sm:$0xff]
      %v343 = vld [vmem:[%s4 + $0x90] sm:$0xff]
      %v344 = vld [vmem:[%s4 + $0x98] sm:$0xff]
      %v345 = vld [vmem:[%s4 + $0xa0] sm:$0xff]
      %v346 = vld [vmem:[%s4 + $0xa8] sm:$0xff]
      %v347 = vld [vmem:[%s4 + $0xb0] sm:$0xff]
      %v348 = vld [vmem:[%s4 + $0xb8] sm:$0xff]
      %v349 = vld [vmem:[%s4 + $0xc0] sm:$0xff]
      %v350 = vld [vmem:[%s4 + $0xc8] sm:$0xff]
      %v351 = vld [vmem:[%s4 + $0xd0] sm:$0xff]
      %v352 = vld [vmem:[%s4 + $0xd8] sm:$0xff]
      %v353 = vld [vmem:[%s4 + $0xe0] sm:$0xff]
      %v354 = vld [vmem:[%s4 + $0xe8] sm:$0xff]
      %v355 = vld [vmem:[%s4 + $0xf0] sm:$0xff]
      %v356 = vld [vmem:[%s4 + $0xf8] sm:$0xff]
      %v357 = vld [vmem:[%s5] sm:$0x3]
      %v358 = vmul.f32 %v324, %v324
      %359 = vadd.xlane.f32.xlu0 %v358
      %v360 = vpop.xlane.xlu0 %359
      %v361 = vmul.f32 %v325, %v325
      %v362 = vmul.f32 %v326, %v326
      %v363 = vmul.f32 %v327, %v327
      %v364 = vmul.f32 %v328, %v328
      %v365 = vmul.f32 %v329, %v329
      %v366 = vmul.f32 %v330, %v330
      %v367 = vmul.f32 %v331, %v331
      %v368 = vmul.f32 %v332, %v332
      %v369 = vmul.f32 %v333, %v333
      %v370 = vmul.f32 %v334, %v334
      %v371 = vmul.f32 %v335, %v335
      %v372 = vmul.f32 %v336, %v336
      %v373 = vmul.f32 %v337, %v337
      %v374 = vmul.f32 %v338, %v338
      %v375 = vmul.f32 %v339, %v339
      %v376 = vmul.f32 %v340, %v340
      %v377 = vmul.f32 %v341, %v341
      %v378 = vmul.f32 %v342, %v342
      %v379 = vmul.f32 %v343, %v343
      %v380 = vmul.f32 %v344, %v344
      %v381 = vmul.f32 %v345, %v345
      %v382 = vmul.f32 %v346, %v346
      %v383 = vmul.f32 %v347, %v347
      %v384 = vmul.f32 %v348, %v348
      %v385 = vmul.f32 %v349, %v349
      %v386 = vmul.f32 %v350, %v350
      %v387 = vmul.f32 %v351, %v351
      %v388 = vmul.f32 %v352, %v352
      %v389 = vmul.f32 %v353, %v353
      %v390 = vmul.f32 %v354, %v354
      %v391 = vmul.f32 %v355, %v355
      %v392 = vmul.f32 %v356, %v356
      %v393 = vadd.f32 %v361, %v363
      %v394 = vadd.f32 %v393, %v365
      %v395 = vadd.f32 %v394, %v367
      %v396 = vadd.f32 %v395, %v369
      %v397 = vadd.f32 %v396, %v371
      %v398 = vadd.f32 %v397, %v373
      %v399 = vadd.f32 %v398, %v375
      %v400 = vadd.f32 %v399, %v377
      %v401 = vadd.f32 %v400, %v379
      %v402 = vadd.f32 %v401, %v381
      %v403 = vadd.f32 %v402, %v383
      %v404 = vadd.f32 %v403, %v385
      %v405 = vadd.f32 %v404, %v387
      %v406 = vadd.f32 %v405, %v389
      %v407 = vadd.f32 %v406, %v391
      %v408 = vrot.slane %v407, 4
      %v409 = vadd.f32 %v407, %v408
      %v410 = vrot.slane %v409, 2
      %v411 = vadd.f32 %v409, %v410
      %v412 = vrot.slane %v411, 1
      %v413 = vadd.f32 %v411, %v412
      %v414 = vadd.f32 %v362, %v364
      %v415 = vadd.f32 %v414, %v366
      %v416 = vadd.f32 %v415, %v368
      %v417 = vadd.f32 %v416, %v370
      %v418 = vadd.f32 %v417, %v372
      %v419 = vadd.f32 %v418, %v374
      %v420 = vadd.f32 %v419, %v376
      %v421 = vadd.f32 %v420, %v378
      %v422 = vadd.f32 %v421, %v380
      %v423 = vadd.f32 %v422, %v382
      %v424 = vadd.f32 %v423, %v384
      %v425 = vadd.f32 %v424, %v386
      %v426 = vadd.f32 %v425, %v388
      %v427 = vadd.f32 %v426, %v390
      %v428 = vadd.f32 %v427, %v392
      %v429 = vrot.slane %v428, 4
      %v430 = vadd.f32 %v428, %v429
      %v431 = vrot.slane %v430, 2
      %v432 = vadd.f32 %v430, %v431
      %v433 = vrot.slane %v432, 1
      %v434 = vadd.f32 %v432, %v433
      %v435 = vand.u32 %v355, 4294901760
      %436 = vmatpush.msra.mxu0 %v435
      %v437 = vand.u32 %v353, 4294901760
      %438 = vmatpush.msra.mxu0 %v437
      %v439 = vand.u32 %v351, 4294901760
      %440 = vmatpush.msra.mxu0 %v439
      %v441 = vand.u32 %v349, 4294901760
      %442 = vmatpush.msra.mxu0 %v441
      %v443 = vand.u32 %v347, 4294901760
      %444 = vmatpush.msra.mxu0 %v443
      %v445 = vand.u32 %v345, 4294901760
      %446 = vmatpush.msra.mxu0 %v445
      %v447 = vand.u32 %v343, 4294901760
      %448 = vmatpush.msra.mxu0 %v447
      %v449 = vand.u32 %v341, 4294901760
      %450 = vmatpush.msra.mxu0 %v449
      %v451 = vand.u32 %v339, 4294901760
      %452 = vmatpush.msra.mxu0 %v451
      %v453 = vand.u32 %v337, 4294901760
      %454 = vmatpush.msra.mxu0 %v453
      %v455 = vand.u32 %v335, 4294901760
      %456 = vmatpush.msra.mxu0 %v455
      %v457 = vand.u32 %v333, 4294901760
      %458 = vmatpush.msra.mxu0 %v457
      %v459 = vand.u32 %v331, 4294901760
      %460 = vmatpush.msra.mxu0 %v459
      %v461 = vand.u32 %v329, 4294901760
      %462 = vmatpush.msra.mxu0 %v461
      %v463 = vand.u32 %v327, 4294901760
      %464 = vmatpush.msra.mxu0 %v463
      %v465 = vand.u32 %v325, 4294901760
      %466 = vmatpush.msra.mxu0 %v465
      %v467 = vand.u32 %v324, 4294901760
      %v468 = vsub.f32 %v324, %v467
      %v469 = vand.u32 %v468, 4294901760
      %v470 = vsub.f32 %v468, %v469
      %v471 = vand.u32 %v470, 4294901760
      %472 = vmatmul.f32.gmra.mxu0 %v471
      %v473 = vpop.f32.mrf.mxu0
      %v474 = vadd.f32 0.0, %v473
      %475 = vdwg.mxu0
      %v476 = vand.u32 %v355, 4294901760
      %v477 = vsub.f32 %v355, %v476
      %v478 = vand.u32 %v477, 4294901760
      %v479 = vsub.f32 %v477, %v478
      %v480 = vand.u32 %v479, 4294901760
      %481 = vmatpush.msra.mxu0 %v480
      %v482 = vand.u32 %v353, 4294901760
      %v483 = vsub.f32 %v353, %v482
      %v484 = vand.u32 %v483, 4294901760
      %v485 = vsub.f32 %v483, %v484
      %v486 = vand.u32 %v485, 4294901760
      %487 = vmatpush.msra.mxu0 %v486
      %v488 = vand.u32 %v351, 4294901760
      %v489 = vsub.f32 %v351, %v488
      %v490 = vand.u32 %v489, 4294901760
      %v491 = vsub.f32 %v489, %v490
      %v492 = vand.u32 %v491, 4294901760
      %493 = vmatpush.msra.mxu0 %v492
      %v494 = vand.u32 %v349, 4294901760
      %v495 = vsub.f32 %v349, %v494
      %v496 = vand.u32 %v495, 4294901760
      %v497 = vsub.f32 %v495, %v496
      %v498 = vand.u32 %v497, 4294901760
      %499 = vmatpush.msra.mxu0 %v498
      %v500 = vand.u32 %v347, 4294901760
      %v501 = vsub.f32 %v347, %v500
      %v502 = vand.u32 %v501, 4294901760
      %v503 = vsub.f32 %v501, %v502
      %v504 = vand.u32 %v503, 4294901760
      %505 = vmatpush.msra.mxu0 %v504
      %v506 = vand.u32 %v345, 4294901760
      %v507 = vsub.f32 %v345, %v506
      %v508 = vand.u32 %v507, 4294901760
      %v509 = vsub.f32 %v507, %v508
      %v510 = vand.u32 %v509, 4294901760
      %511 = vmatpush.msra.mxu0 %v510
      %v512 = vand.u32 %v343, 4294901760
      %v513 = vsub.f32 %v343, %v512
      %v514 = vand.u32 %v513, 4294901760
      %v515 = vsub.f32 %v513, %v514
      %v516 = vand.u32 %v515, 4294901760
      %517 = vmatpush.msra.mxu0 %v516
      %v518 = vand.u32 %v341, 4294901760
      %v519 = vsub.f32 %v341, %v518
      %v520 = vand.u32 %v519, 4294901760
      %v521 = vsub.f32 %v519, %v520
      %v522 = vand.u32 %v521, 4294901760
      %523 = vmatpush.msra.mxu0 %v522
      %v524 = vand.u32 %v339, 4294901760
      %v525 = vsub.f32 %v339, %v524
      %v526 = vand.u32 %v525, 4294901760
      %v527 = vsub.f32 %v525, %v526
      %v528 = vand.u32 %v527, 4294901760
      %529 = vmatpush.msra.mxu0 %v528
      %v530 = vand.u32 %v337, 4294901760
      %v531 = vsub.f32 %v337, %v530
      %v532 = vand.u32 %v531, 4294901760
      %v533 = vsub.f32 %v531, %v532
      %v534 = vand.u32 %v533, 4294901760
      %535 = vmatpush.msra.mxu0 %v534
      %v536 = vand.u32 %v335, 4294901760
      %v537 = vsub.f32 %v335, %v536
      %v538 = vand.u32 %v537, 4294901760
      %v539 = vsub.f32 %v537, %v538
      %v540 = vand.u32 %v539, 4294901760
      %541 = vmatpush.msra.mxu0 %v540
      %v542 = vand.u32 %v333, 4294901760
      %v543 = vsub.f32 %v333, %v542
      %v544 = vand.u32 %v543, 4294901760
      %v545 = vsub.f32 %v543, %v544
      %v546 = vand.u32 %v545, 4294901760
      %547 = vmatpush.msra.mxu0 %v546
      %v548 = vand.u32 %v331, 4294901760
      %v549 = vsub.f32 %v331, %v548
      %v550 = vand.u32 %v549, 4294901760
      %v551 = vsub.f32 %v549, %v550
      %v552 = vand.u32 %v551, 4294901760
      %553 = vmatpush.msra.mxu0 %v552
      %v554 = vand.u32 %v329, 4294901760
      %v555 = vsub.f32 %v329, %v554
      %v556 = vand.u32 %v555, 4294901760
      %v557 = vsub.f32 %v555, %v556
      %v558 = vand.u32 %v557, 4294901760
      %559 = vmatpush.msra.mxu0 %v558
      %v560 = vand.u32 %v327, 4294901760
      %v561 = vsub.f32 %v327, %v560
      %v562 = vand.u32 %v561, 4294901760
      %v563 = vsub.f32 %v561, %v562
      %v564 = vand.u32 %v563, 4294901760
      %565 = vmatpush.msra.mxu0 %v564
      %v566 = vand.u32 %v325, 4294901760
      %v567 = vsub.f32 %v325, %v566
      %v568 = vand.u32 %v567, 4294901760
      %v569 = vsub.f32 %v567, %v568
      %v570 = vand.u32 %v569, 4294901760
      %571 = vmatpush.msra.mxu0 %v570
      %v572 = vand.u32 %v324, 4294901760
      %573 = vmatmul.f32.gmra.mxu0 %v572
      %v574 = vpop.f32.mrf.mxu0
      %v575 = vadd.f32 %v474, %v574
      %576 = vdwg.mxu0
      %v577 = vand.u32 %v355, 4294901760
      %v578 = vsub.f32 %v355, %v577
      %579 = vmatpush.msra.mxu0 %v578
      %v580 = vand.u32 %v353, 4294901760
      %v581 = vsub.f32 %v353, %v580
      %582 = vmatpush.msra.mxu0 %v581
      %v583 = vand.u32 %v351, 4294901760
      %v584 = vsub.f32 %v351, %v583
      %585 = vmatpush.msra.mxu0 %v584
      %v586 = vand.u32 %v349, 4294901760
      %v587 = vsub.f32 %v349, %v586
      %588 = vmatpush.msra.mxu0 %v587
      %v589 = vand.u32 %v347, 4294901760
      %v590 = vsub.f32 %v347, %v589
      %591 = vmatpush.msra.mxu0 %v590
      %v592 = vand.u32 %v345, 4294901760
      %v593 = vsub.f32 %v345, %v592
      %594 = vmatpush.msra.mxu0 %v593
      %v595 = vand.u32 %v343, 4294901760
      %v596 = vsub.f32 %v343, %v595
      %597 = vmatpush.msra.mxu0 %v596
      %v598 = vand.u32 %v341, 4294901760
      %v599 = vsub.f32 %v341, %v598
      %600 = vmatpush.msra.mxu0 %v599
      %v601 = vand.u32 %v339, 4294901760
      %v602 = vsub.f32 %v339, %v601
      %603 = vmatpush.msra.mxu0 %v602
      %v604 = vand.u32 %v337, 4294901760
      %v605 = vsub.f32 %v337, %v604
      %606 = vmatpush.msra.mxu0 %v605
      %v607 = vand.u32 %v335, 4294901760
      %v608 = vsub.f32 %v335, %v607
      %609 = vmatpush.msra.mxu0 %v608
      %v610 = vand.u32 %v333, 4294901760
      %v611 = vsub.f32 %v333, %v610
      %612 = vmatpush.msra.mxu0 %v611
      %v613 = vand.u32 %v331, 4294901760
      %v614 = vsub.f32 %v331, %v613
      %615 = vmatpush.msra.mxu0 %v614
      %v616 = vand.u32 %v329, 4294901760
      %v617 = vsub.f32 %v329, %v616
      %618 = vmatpush.msra.mxu0 %v617
      %v619 = vand.u32 %v327, 4294901760
      %v620 = vsub.f32 %v327, %v619
      %621 = vmatpush.msra.mxu0 %v620
      %v622 = vand.u32 %v325, 4294901760
      %v623 = vsub.f32 %v325, %v622
      %624 = vmatpush.msra.mxu0 %v623
      %v625 = vand.u32 %v324, 4294901760
      %v626 = vsub.f32 %v324, %v625
      %627 = vmatmul.f32.gmra.mxu0 %v626
      %v628 = vpop.f32.mrf.mxu0
      %v629 = vadd.f32 %v575, %v628
      %630 = vdwg.mxu0
      %v631 = vand.u32 %v355, 4294901760
      %632 = vmatpush.msra.mxu0 %v631
      %v633 = vand.u32 %v353, 4294901760
      %634 = vmatpush.msra.mxu0 %v633
      %v635 = vand.u32 %v351, 4294901760
      %636 = vmatpush.msra.mxu0 %v635
      %v637 = vand.u32 %v349, 4294901760
      %638 = vmatpush.msra.mxu0 %v637
      %v639 = vand.u32 %v347, 4294901760
      %640 = vmatpush.msra.mxu0 %v639
      %v641 = vand.u32 %v345, 4294901760
      %642 = vmatpush.msra.mxu0 %v641
      %v643 = vand.u32 %v343, 4294901760
      %644 = vmatpush.msra.mxu0 %v643
      %v645 = vand.u32 %v341, 4294901760
      %646 = vmatpush.msra.mxu0 %v645
      %v647 = vand.u32 %v339, 4294901760
      %648 = vmatpush.msra.mxu0 %v647
      %v649 = vand.u32 %v337, 4294901760
      %650 = vmatpush.msra.mxu0 %v649
      %v651 = vand.u32 %v335, 4294901760
      %652 = vmatpush.msra.mxu0 %v651
      %v653 = vand.u32 %v333, 4294901760
      %654 = vmatpush.msra.mxu0 %v653
      %v655 = vand.u32 %v331, 4294901760
      %656 = vmatpush.msra.mxu0 %v655
      %v657 = vand.u32 %v329, 4294901760
      %658 = vmatpush.msra.mxu0 %v657
      %v659 = vand.u32 %v327, 4294901760
      %660 = vmatpush.msra.mxu0 %v659
      %v661 = vand.u32 %v325, 4294901760
      %662 = vmatpush.msra.mxu0 %v661
      %v663 = vand.u32 %v324, 4294901760
      %v664 = vsub.f32 %v324, %v663
      %v665 = vand.u32 %v664, 4294901760
      %666 = vmatmul.f32.gmra.mxu0 %v665
      %v667 = vpop.f32.mrf.mxu0
      %v668 = vadd.f32 %v629, %v667
      %669 = vdwg.mxu0
      %v670 = vand.u32 %v355, 4294901760
      %v671 = vsub.f32 %v355, %v670
      %v672 = vand.u32 %v671, 4294901760
      %673 = vmatpush.msra.mxu0 %v672
      %v674 = vand.u32 %v353, 4294901760
      %v675 = vsub.f32 %v353, %v674
      %v676 = vand.u32 %v675, 4294901760
      %677 = vmatpush.msra.mxu0 %v676
      %v678 = vand.u32 %v351, 4294901760
      %v679 = vsub.f32 %v351, %v678
      %v680 = vand.u32 %v679, 4294901760
      %681 = vmatpush.msra.mxu0 %v680
      %v682 = vand.u32 %v349, 4294901760
      %v683 = vsub.f32 %v349, %v682
      %v684 = vand.u32 %v683, 4294901760
      %685 = vmatpush.msra.mxu0 %v684
      %v686 = vand.u32 %v347, 4294901760
      %v687 = vsub.f32 %v347, %v686
      %v688 = vand.u32 %v687, 4294901760
      %689 = vmatpush.msra.mxu0 %v688
      %v690 = vand.u32 %v345, 4294901760
      %v691 = vsub.f32 %v345, %v690
      %v692 = vand.u32 %v691, 4294901760
      %693 = vmatpush.msra.mxu0 %v692
      %v694 = vand.u32 %v343, 4294901760
      %v695 = vsub.f32 %v343, %v694
      %v696 = vand.u32 %v695, 4294901760
      %697 = vmatpush.msra.mxu0 %v696
      %v698 = vand.u32 %v341, 4294901760
      %v699 = vsub.f32 %v341, %v698
      %v700 = vand.u32 %v699, 4294901760
      %701 = vmatpush.msra.mxu0 %v700
      %v702 = vand.u32 %v339, 4294901760
      %v703 = vsub.f32 %v339, %v702
      %v704 = vand.u32 %v703, 4294901760
      %705 = vmatpush.msra.mxu0 %v704
      %v706 = vand.u32 %v337, 4294901760
      %v707 = vsub.f32 %v337, %v706
      %v708 = vand.u32 %v707, 4294901760
      %709 = vmatpush.msra.mxu0 %v708
      %v710 = vand.u32 %v335, 4294901760
      %v711 = vsub.f32 %v335, %v710
      %v712 = vand.u32 %v711, 4294901760
      %713 = vmatpush.msra.mxu0 %v712
      %v714 = vand.u32 %v333, 4294901760
      %v715 = vsub.f32 %v333, %v714
      %v716 = vand.u32 %v715, 4294901760
      %717 = vmatpush.msra.mxu0 %v716
      %v718 = vand.u32 %v331, 4294901760
      %v719 = vsub.f32 %v331, %v718
      %v720 = vand.u32 %v719, 4294901760
      %721 = vmatpush.msra.mxu0 %v720
      %v722 = vand.u32 %v329, 4294901760
      %v723 = vsub.f32 %v329, %v722
      %v724 = vand.u32 %v723, 4294901760
      %725 = vmatpush.msra.mxu0 %v724
      %v726 = vand.u32 %v327, 4294901760
      %v727 = vsub.f32 %v327, %v726
      %v728 = vand.u32 %v727, 4294901760
      %729 = vmatpush.msra.mxu0 %v728
      %v730 = vand.u32 %v325, 4294901760
      %v731 = vsub.f32 %v325, %v730
      %v732 = vand.u32 %v731, 4294901760
      %733 = vmatpush.msra.mxu0 %v732
      %v734 = vand.u32 %v324, 4294901760
      %735 = vmatmul.f32.gmra.mxu0 %v734
      %v736 = vpop.f32.mrf.mxu0
      %v737 = vadd.f32 %v668, %v736
      %738 = vdwg.mxu0
      %v739 = vand.u32 %v355, 4294901760
      %740 = vmatpush.msra.mxu0 %v739
      %v741 = vand.u32 %v353, 4294901760
      %742 = vmatpush.msra.mxu0 %v741
      %v743 = vand.u32 %v351, 4294901760
      %744 = vmatpush.msra.mxu0 %v743
      %v745 = vand.u32 %v349, 4294901760
      %746 = vmatpush.msra.mxu0 %v745
      %v747 = vand.u32 %v347, 4294901760
      %748 = vmatpush.msra.mxu0 %v747
      %v749 = vand.u32 %v345, 4294901760
      %750 = vmatpush.msra.mxu0 %v749
      %v751 = vand.u32 %v343, 4294901760
      %752 = vmatpush.msra.mxu0 %v751
      %v753 = vand.u32 %v341, 4294901760
      %754 = vmatpush.msra.mxu0 %v753
      %v755 = vand.u32 %v339, 4294901760
      %756 = vmatpush.msra.mxu0 %v755
      %v757 = vand.u32 %v337, 4294901760
      %758 = vmatpush.msra.mxu0 %v757
      %v759 = vand.u32 %v335, 4294901760
      %760 = vmatpush.msra.mxu0 %v759
      %v761 = vand.u32 %v333, 4294901760
      %762 = vmatpush.msra.mxu0 %v761
      %v763 = vand.u32 %v331, 4294901760
      %764 = vmatpush.msra.mxu0 %v763
      %v765 = vand.u32 %v329, 4294901760
      %766 = vmatpush.msra.mxu0 %v765
      %v767 = vand.u32 %v327, 4294901760
      %768 = vmatpush.msra.mxu0 %v767
      %v769 = vand.u32 %v325, 4294901760
      %770 = vmatpush.msra.mxu0 %v769
      %v771 = vand.u32 %v324, 4294901760
      %772 = vmatmul.f32.gmra.mxu0 %v771
      %v773 = vpop.f32.mrf.mxu0
      %v774 = vadd.f32 %v737, %v773
      %775 = vdwg.mxu0
      %v776 = vand.u32 %v356, 4294901760
      %777 = vmatpush.msra.mxu0 %v776
      %v778 = vand.u32 %v354, 4294901760
      %779 = vmatpush.msra.mxu0 %v778
      %v780 = vand.u32 %v352, 4294901760
      %781 = vmatpush.msra.mxu0 %v780
      %v782 = vand.u32 %v350, 4294901760
      %783 = vmatpush.msra.mxu0 %v782
      %v784 = vand.u32 %v348, 4294901760
      %785 = vmatpush.msra.mxu0 %v784
      %v786 = vand.u32 %v346, 4294901760
      %787 = vmatpush.msra.mxu0 %v786
      %v788 = vand.u32 %v344, 4294901760
      %789 = vmatpush.msra.mxu0 %v788
      %v790 = vand.u32 %v342, 4294901760
      %791 = vmatpush.msra.mxu0 %v790
      %v792 = vand.u32 %v340, 4294901760
      %793 = vmatpush.msra.mxu0 %v792
      %v794 = vand.u32 %v338, 4294901760
      %795 = vmatpush.msra.mxu0 %v794
      %v796 = vand.u32 %v336, 4294901760
      %797 = vmatpush.msra.mxu0 %v796
      %v798 = vand.u32 %v334, 4294901760
      %799 = vmatpush.msra.mxu0 %v798
      %v800 = vand.u32 %v332, 4294901760
      %801 = vmatpush.msra.mxu0 %v800
      %v802 = vand.u32 %v330, 4294901760
      %803 = vmatpush.msra.mxu0 %v802
      %v804 = vand.u32 %v328, 4294901760
      %805 = vmatpush.msra.mxu0 %v804
      %v806 = vand.u32 %v326, 4294901760
      %807 = vmatpush.msra.mxu0 %v806
      %v808 = vand.u32 %v324, 4294901760
      %v809 = vsub.f32 %v324, %v808
      %v810 = vand.u32 %v809, 4294901760
      %v811 = vsub.f32 %v809, %v810
      %v812 = vand.u32 %v811, 4294901760
      %813 = vmatmul.f32.gmra.mxu0 %v812
      %v814 = vpop.f32.mrf.mxu0
      %v815 = vadd.f32 0.0, %v814
      %816 = vdwg.mxu0
      %v817 = vand.u32 %v356, 4294901760
      %v818 = vsub.f32 %v356, %v817
      %v819 = vand.u32 %v818, 4294901760
      %v820 = vsub.f32 %v818, %v819
      %v821 = vand.u32 %v820, 4294901760
      %822 = vmatpush.msra.mxu0 %v821
      %v823 = vand.u32 %v354, 4294901760
      %v824 = vsub.f32 %v354, %v823
      %v825 = vand.u32 %v824, 4294901760
      %v826 = vsub.f32 %v824, %v825
      %v827 = vand.u32 %v826, 4294901760
      %828 = vmatpush.msra.mxu0 %v827
      %v829 = vand.u32 %v352, 4294901760
      %v830 = vsub.f32 %v352, %v829
      %v831 = vand.u32 %v830, 4294901760
      %v832 = vsub.f32 %v830, %v831
      %v833 = vand.u32 %v832, 4294901760
      %834 = vmatpush.msra.mxu0 %v833
      %v835 = vand.u32 %v350, 4294901760
      %v836 = vsub.f32 %v350, %v835
      %v837 = vand.u32 %v836, 4294901760
      %v838 = vsub.f32 %v836, %v837
      %v839 = vand.u32 %v838, 4294901760
      %840 = vmatpush.msra.mxu0 %v839
      %v841 = vand.u32 %v348, 4294901760
      %v842 = vsub.f32 %v348, %v841
      %v843 = vand.u32 %v842, 4294901760
      %v844 = vsub.f32 %v842, %v843
      %v845 = vand.u32 %v844, 4294901760
      %846 = vmatpush.msra.mxu0 %v845
      %v847 = vand.u32 %v346, 4294901760
      %v848 = vsub.f32 %v346, %v847
      %v849 = vand.u32 %v848, 4294901760
      %v850 = vsub.f32 %v848, %v849
      %v851 = vand.u32 %v850, 4294901760
      %852 = vmatpush.msra.mxu0 %v851
      %v853 = vand.u32 %v344, 4294901760
      %v854 = vsub.f32 %v344, %v853
      %v855 = vand.u32 %v854, 4294901760
      %v856 = vsub.f32 %v854, %v855
      %v857 = vand.u32 %v856, 4294901760
      %858 = vmatpush.msra.mxu0 %v857
      %v859 = vand.u32 %v342, 4294901760
      %v860 = vsub.f32 %v342, %v859
      %v861 = vand.u32 %v860, 4294901760
      %v862 = vsub.f32 %v860, %v861
      %v863 = vand.u32 %v862, 4294901760
      %864 = vmatpush.msra.mxu0 %v863
      %v865 = vand.u32 %v340, 4294901760
      %v866 = vsub.f32 %v340, %v865
      %v867 = vand.u32 %v866, 4294901760
      %v868 = vsub.f32 %v866, %v867
      %v869 = vand.u32 %v868, 4294901760
      %870 = vmatpush.msra.mxu0 %v869
      %v871 = vand.u32 %v338, 4294901760
      %v872 = vsub.f32 %v338, %v871
      %v873 = vand.u32 %v872, 4294901760
      %v874 = vsub.f32 %v872, %v873
      %v875 = vand.u32 %v874, 4294901760
      %876 = vmatpush.msra.mxu0 %v875
      %v877 = vand.u32 %v336, 4294901760
      %v878 = vsub.f32 %v336, %v877
      %v879 = vand.u32 %v878, 4294901760
      %v880 = vsub.f32 %v878, %v879
      %v881 = vand.u32 %v880, 4294901760
      %882 = vmatpush.msra.mxu0 %v881
      %v883 = vand.u32 %v334, 4294901760
      %v884 = vsub.f32 %v334, %v883
      %v885 = vand.u32 %v884, 4294901760
      %v886 = vsub.f32 %v884, %v885
      %v887 = vand.u32 %v886, 4294901760
      %888 = vmatpush.msra.mxu0 %v887
      %v889 = vand.u32 %v332, 4294901760
      %v890 = vsub.f32 %v332, %v889
      %v891 = vand.u32 %v890, 4294901760
      %v892 = vsub.f32 %v890, %v891
      %v893 = vand.u32 %v892, 4294901760
      %894 = vmatpush.msra.mxu0 %v893
      %v895 = vand.u32 %v330, 4294901760
      %v896 = vsub.f32 %v330, %v895
      %v897 = vand.u32 %v896, 4294901760
      %v898 = vsub.f32 %v896, %v897
      %v899 = vand.u32 %v898, 4294901760
      %900 = vmatpush.msra.mxu0 %v899
      %v901 = vand.u32 %v328, 4294901760
      %v902 = vsub.f32 %v328, %v901
      %v903 = vand.u32 %v902, 4294901760
      %v904 = vsub.f32 %v902, %v903
      %v905 = vand.u32 %v904, 4294901760
      %906 = vmatpush.msra.mxu0 %v905
      %v907 = vand.u32 %v326, 4294901760
      %v908 = vsub.f32 %v326, %v907
      %v909 = vand.u32 %v908, 4294901760
      %v910 = vsub.f32 %v908, %v909
      %v911 = vand.u32 %v910, 4294901760
      %912 = vmatpush.msra.mxu0 %v911
      %v913 = vand.u32 %v324, 4294901760
      %914 = vmatmul.f32.gmra.mxu0 %v913
      %v915 = vpop.f32.mrf.mxu0
      %v916 = vadd.f32 %v815, %v915
      %917 = vdwg.mxu0
      %v918 = vand.u32 %v356, 4294901760
      %v919 = vsub.f32 %v356, %v918
      %920 = vmatpush.msra.mxu0 %v919
      %v921 = vand.u32 %v354, 4294901760
      %v922 = vsub.f32 %v354, %v921
      %923 = vmatpush.msra.mxu0 %v922
      %v924 = vand.u32 %v352, 4294901760
      %v925 = vsub.f32 %v352, %v924
      %926 = vmatpush.msra.mxu0 %v925
      %v927 = vand.u32 %v350, 4294901760
      %v928 = vsub.f32 %v350, %v927
      %929 = vmatpush.msra.mxu0 %v928
      %v930 = vand.u32 %v348, 4294901760
      %v931 = vsub.f32 %v348, %v930
      %932 = vmatpush.msra.mxu0 %v931
      %v933 = vand.u32 %v346, 4294901760
      %v934 = vsub.f32 %v346, %v933
      %935 = vmatpush.msra.mxu0 %v934
      %v936 = vand.u32 %v344, 4294901760
      %v937 = vsub.f32 %v344, %v936
      %938 = vmatpush.msra.mxu0 %v937
      %v939 = vand.u32 %v342, 4294901760
      %v940 = vsub.f32 %v342, %v939
      %941 = vmatpush.msra.mxu0 %v940
      %v942 = vand.u32 %v340, 4294901760
      %v943 = vsub.f32 %v340, %v942
      %944 = vmatpush.msra.mxu0 %v943
      %v945 = vand.u32 %v338, 4294901760
      %v946 = vsub.f32 %v338, %v945
      %947 = vmatpush.msra.mxu0 %v946
      %v948 = vand.u32 %v336, 4294901760
      %v949 = vsub.f32 %v336, %v948
      %950 = vmatpush.msra.mxu0 %v949
      %v951 = vand.u32 %v334, 4294901760
      %v952 = vsub.f32 %v334, %v951
      %953 = vmatpush.msra.mxu0 %v952
      %v954 = vand.u32 %v332, 4294901760
      %v955 = vsub.f32 %v332, %v954
      %956 = vmatpush.msra.mxu0 %v955
      %v957 = vand.u32 %v330, 4294901760
      %v958 = vsub.f32 %v330, %v957
      %959 = vmatpush.msra.mxu0 %v958
      %v960 = vand.u32 %v328, 4294901760
      %v961 = vsub.f32 %v328, %v960
      %962 = vmatpush.msra.mxu0 %v961
      %v963 = vand.u32 %v326, 4294901760
      %v964 = vsub.f32 %v326, %v963
      %965 = vmatpush.msra.mxu0 %v964
      %v966 = vand.u32 %v324, 4294901760
      %v967 = vsub.f32 %v324, %v966
      %968 = vmatmul.f32.gmra.mxu0 %v967
      %v969 = vpop.f32.mrf.mxu0
      %v970 = vadd.f32 %v916, %v969
      %971 = vdwg.mxu0
      %v972 = vand.u32 %v356, 4294901760
      %973 = vmatpush.msra.mxu0 %v972
      %v974 = vand.u32 %v354, 4294901760
      %975 = vmatpush.msra.mxu0 %v974
      %v976 = vand.u32 %v352, 4294901760
      %977 = vmatpush.msra.mxu0 %v976
      %v978 = vand.u32 %v350, 4294901760
      %979 = vmatpush.msra.mxu0 %v978
      %v980 = vand.u32 %v348, 4294901760
      %981 = vmatpush.msra.mxu0 %v980
      %v982 = vand.u32 %v346, 4294901760
      %983 = vmatpush.msra.mxu0 %v982
      %v984 = vand.u32 %v344, 4294901760
      %985 = vmatpush.msra.mxu0 %v984
      %v986 = vand.u32 %v342, 4294901760
      %987 = vmatpush.msra.mxu0 %v986
      %v988 = vand.u32 %v340, 4294901760
      %989 = vmatpush.msra.mxu0 %v988
      %v990 = vand.u32 %v338, 4294901760
      %991 = vmatpush.msra.mxu0 %v990
      %v992 = vand.u32 %v336, 4294901760
      %993 = vmatpush.msra.mxu0 %v992
      %v994 = vand.u32 %v334, 4294901760
      %995 = vmatpush.msra.mxu0 %v994
      %v996 = vand.u32 %v332, 4294901760
      %997 = vmatpush.msra.mxu0 %v996
      %v998 = vand.u32 %v330, 4294901760
      %999 = vmatpush.msra.mxu0 %v998
      %v1000 = vand.u32 %v328, 4294901760
      %1001 = vmatpush.msra.mxu0 %v1000
      %v1002 = vand.u32 %v326, 4294901760
      %1003 = vmatpush.msra.mxu0 %v1002
      %v1004 = vand.u32 %v324, 4294901760
      %v1005 = vsub.f32 %v324, %v1004
      %v1006 = vand.u32 %v1005, 4294901760
      %1007 = vmatmul.f32.gmra.mxu0 %v1006
      %v1008 = vpop.f32.mrf.mxu0
      %v1009 = vadd.f32 %v970, %v1008
      %1010 = vdwg.mxu0
      %v1011 = vand.u32 %v356, 4294901760
      %v1012 = vsub.f32 %v356, %v1011
      %v1013 = vand.u32 %v1012, 4294901760
      %1014 = vmatpush.msra.mxu0 %v1013
      %v1015 = vand.u32 %v354, 4294901760
      %v1016 = vsub.f32 %v354, %v1015
      %v1017 = vand.u32 %v1016, 4294901760
      %1018 = vmatpush.msra.mxu0 %v1017
      %v1019 = vand.u32 %v352, 4294901760
      %v1020 = vsub.f32 %v352, %v1019
      %v1021 = vand.u32 %v1020, 4294901760
      %1022 = vmatpush.msra.mxu0 %v1021
      %v1023 = vand.u32 %v350, 4294901760
      %v1024 = vsub.f32 %v350, %v1023
      %v1025 = vand.u32 %v1024, 4294901760
      %1026 = vmatpush.msra.mxu0 %v1025
      %v1027 = vand.u32 %v348, 4294901760
      %v1028 = vsub.f32 %v348, %v1027
      %v1029 = vand.u32 %v1028, 4294901760
      %1030 = vmatpush.msra.mxu0 %v1029
      %v1031 = vand.u32 %v346, 4294901760
      %v1032 = vsub.f32 %v346, %v1031
      %v1033 = vand.u32 %v1032, 4294901760
      %1034 = vmatpush.msra.mxu0 %v1033
      %v1035 = vand.u32 %v344, 4294901760
      %v1036 = vsub.f32 %v344, %v1035
      %v1037 = vand.u32 %v1036, 4294901760
      %1038 = vmatpush.msra.mxu0 %v1037
      %v1039 = vand.u32 %v342, 4294901760
      %v1040 = vsub.f32 %v342, %v1039
      %v1041 = vand.u32 %v1040, 4294901760
      %1042 = vmatpush.msra.mxu0 %v1041
      %v1043 = vand.u32 %v340, 4294901760
      %v1044 = vsub.f32 %v340, %v1043
      %v1045 = vand.u32 %v1044, 4294901760
      %1046 = vmatpush.msra.mxu0 %v1045
      %v1047 = vand.u32 %v338, 4294901760
      %v1048 = vsub.f32 %v338, %v1047
      %v1049 = vand.u32 %v1048, 4294901760
      %1050 = vmatpush.msra.mxu0 %v1049
      %v1051 = vand.u32 %v336, 4294901760
      %v1052 = vsub.f32 %v336, %v1051
      %v1053 = vand.u32 %v1052, 4294901760
      %1054 = vmatpush.msra.mxu0 %v1053
      %v1055 = vand.u32 %v334, 4294901760
      %v1056 = vsub.f32 %v334, %v1055
      %v1057 = vand.u32 %v1056, 4294901760
      %1058 = vmatpush.msra.mxu0 %v1057
      %v1059 = vand.u32 %v332, 4294901760
      %v1060 = vsub.f32 %v332, %v1059
      %v1061 = vand.u32 %v1060, 4294901760
      %1062 = vmatpush.msra.mxu0 %v1061
      %v1063 = vand.u32 %v330, 4294901760
      %v1064 = vsub.f32 %v330, %v1063
      %v1065 = vand.u32 %v1064, 4294901760
      %1066 = vmatpush.msra.mxu0 %v1065
      %v1067 = vand.u32 %v328, 4294901760
      %v1068 = vsub.f32 %v328, %v1067
      %v1069 = vand.u32 %v1068, 4294901760
      %1070 = vmatpush.msra.mxu0 %v1069
      %v1071 = vand.u32 %v326, 4294901760
      %v1072 = vsub.f32 %v326, %v1071
      %v1073 = vand.u32 %v1072, 4294901760
      %1074 = vmatpush.msra.mxu0 %v1073
      %v1075 = vand.u32 %v324, 4294901760
      %1076 = vmatmul.f32.gmra.mxu0 %v1075
      %v1077 = vpop.f32.mrf.mxu0
      %v1078 = vadd.f32 %v1009, %v1077
      %1079 = vdwg.mxu0
      %v1080 = vand.u32 %v356, 4294901760
      %1081 = vmatpush.msra.mxu0 %v1080
      %v1082 = vand.u32 %v354, 4294901760
      %1083 = vmatpush.msra.mxu0 %v1082
      %v1084 = vand.u32 %v352, 4294901760
      %1085 = vmatpush.msra.mxu0 %v1084
      %v1086 = vand.u32 %v350, 4294901760
      %1087 = vmatpush.msra.mxu0 %v1086
      %v1088 = vand.u32 %v348, 4294901760
      %1089 = vmatpush.msra.mxu0 %v1088
      %v1090 = vand.u32 %v346, 4294901760
      %1091 = vmatpush.msra.mxu0 %v1090
      %v1092 = vand.u32 %v344, 4294901760
      %1093 = vmatpush.msra.mxu0 %v1092
      %v1094 = vand.u32 %v342, 4294901760
      %1095 = vmatpush.msra.mxu0 %v1094
      %v1096 = vand.u32 %v340, 4294901760
      %1097 = vmatpush.msra.mxu0 %v1096
      %v1098 = vand.u32 %v338, 4294901760
      %1099 = vmatpush.msra.mxu0 %v1098
      %v1100 = vand.u32 %v336, 4294901760
      %1101 = vmatpush.msra.mxu0 %v1100
      %v1102 = vand.u32 %v334, 4294901760
      %1103 = vmatpush.msra.mxu0 %v1102
      %v1104 = vand.u32 %v332, 4294901760
      %1105 = vmatpush.msra.mxu0 %v1104
      %v1106 = vand.u32 %v330, 4294901760
      %1107 = vmatpush.msra.mxu0 %v1106
      %v1108 = vand.u32 %v328, 4294901760
      %1109 = vmatpush.msra.mxu0 %v1108
      %v1110 = vand.u32 %v326, 4294901760
      %1111 = vmatpush.msra.mxu0 %v1110
      %v1112 = vand.u32 %v324, 4294901760
      %1113 = vmatmul.f32.gmra.mxu0 %v1112
      %v1114 = vpop.f32.mrf.mxu0
      %v1115 = vadd.f32 %v1078, %v1114
      %1116 = vdwg.mxu0
      %v1117 = vadd.f32 %v360, %v413
      %v1118 = vadd.f32 %v360, %v434
      %v1119 = vmul.f32 %v774, 2.0
      %v1120 = vmul.f32 %v1115, 2.0
      %v1121 = vsub.f32 %v1117, %v1119
      %v1122 = vsub.f32 %v1118, %v1120
      %vm1123 = vcmp.ne.f32.partialorder %v1121, %v1121
      %vm1124 = vcmp.ne.f32.partialorder %v1122, %v1122
      %v1125 = vsel %vm1123, 0.0, %v1121
      %v1126 = vsel %vm1124, 0.0, %v1122
      %v1127 = vmax.f32 %v1125, 0.0
      %v1128 = vmax.f32 %v1126, 0.0
      %v1129 = vrot.slane %v1127, 4
      %v1130 = vadd.f32 %v1127, %v1129
      %v1131 = vrot.slane %v1130, 2
      %v1132 = vadd.f32 %v1130, %v1131
      %v1133 = vrot.slane %v1132, 1
      %v1134 = vadd.f32 %v1132, %v1133
      %v1135 = vrot.slane %v1128, 4
      %v1136 = vadd.f32 %v1128, %v1135
      %v1137 = vrot.slane %v1136, 2
      %v1138 = vadd.f32 %v1136, %v1137
      %v1139 = vrot.slane %v1138, 1
      %v1140 = vadd.f32 %v1138, %v1139
      %v1141 = vrsqrt.pop %v1134
      %v1142 = vmul.f32 %v1141, %v1134
      %v1143 = vmul.f32 %v1142, %v1141
      %v1144 = vmul.f32 0.5, %v1143
      %v1145 = vsub.f32 1.5, %v1144
      %v1146 = vmul.f32 %v1141, %v1145
      %v1147 = vmul.f32 %v1134, %v1146
      %vm1148 = vcmp.eq.f32.partialorder %v1134, inf
      %v1149 = vsel %vm1148, %v1134, %v1147
      %vm1150 = vcmp.eq.f32.partialorder %v1134, 0.0
      %v1151 = vand.u32 %v1134, 2147483648
      %v1152 = vsel %vm1150, %v1151, %v1149
      %v1153 = vrsqrt.pop %v1140
      %v1154 = vmul.f32 %v1153, %v1140
      %v1155 = vmul.f32 %v1154, %v1153
      %v1156 = vmul.f32 0.5, %v1155
      %v1157 = vsub.f32 1.5, %v1156
      %v1158 = vmul.f32 %v1153, %v1157
      %v1159 = vmul.f32 %v1140, %v1158
      %vm1160 = vcmp.eq.f32.partialorder %v1140, inf
      %v1161 = vsel %vm1160, %v1140, %v1159
      %vm1162 = vcmp.eq.f32.partialorder %v1140, 0.0
      %v1163 = vand.u32 %v1140, 2147483648
      %v1164 = vsel %vm1162, %v1163, %v1161
      %v1167 = vrot.slane %v1164, 7
      %vm1168 = vcmask 1040384
      %v1169 = vsel %vm1168, %v1152, %v1167
      %v1171 = vlaneseq
      %vm1172 = vcmp.ge.s32.totalorder %v1171, 0
      %vm1173 = vcmp.lt.s32.totalorder %v1171, 256
      %vm1174 = vmand %vm1172, %vm1173
      %1175 = vst.msk [vmem:[%s247] sm:$0x3] %vm1174, %v1169
      %v1176 = vlaneseq
      %v1177 = vand.u32 %v1176, 127
      %v1178 = vadd.s32 %v1177, 128
      %v1179 = vcvt.s32.f32 %v1177
      %v1180 = vcvt.s32.f32 %v1178
      %v1181 = vmin.f32 %v1152, %v1164
      %1182 = vmin.xlane.f32.xlu0 %v1181
      %v1183 = vpop.xlane.xlu0 %1182
      %vm1184 = vcmp.eq.f32.partialorder %v1152, %v1183
      %vm1185 = vcmp.eq.f32.partialorder %v1164, %v1183
      %v1186 = vsel %vm1184, %v1179, 256.0
      %v1187 = vsel %vm1185, %v1180, 256.0
      %v1188 = vmin.f32 %v1186, %v1187
      %1189 = vmin.xlane.f32.xlu0 %v1188
      %v1190 = vpop.xlane.xlu0 %1189
      %vm1191 = vcmp.eq.f32.partialorder %v1179, %v1190
      %vm1192 = vcmp.eq.f32.partialorder %v1180, %v1190
      %v1193 = vcvt.f32.s32.to.zero.pseudo %v1190
      %s1194 = smul.u32 %s27, 128
      %s1195 = sld [smem:[#allocation3 + %s1194]]
      %s1196 = sadd.s32 %s1194, 1
      %s1197 = sld [smem:[#allocation3 + %s1196]]
      %v1198 = vcvt.s32.f32 %v357
      %v1200 = vperm.slane %v1198, 0
      %v1201 = vperm.slane %v1198, 1
      %v1204 = vsel %vm1191, %v1200, 0.0
      %v1205 = vsel %vm1192, %v1201, 0.0
      %v1206 = vsel %vm1168, %v1204, 0.0
      %v1207 = vsel %vm1168, %v1205, 0.0
      %v1208 = vadd.f32 %v1206, %v1207
      %1209 = vadd.xlane.f32.xlu0 %v1208
      %v1210 = vpop.xlane.xlu0 %1209
      %v1211 = vcvt.f32.s32.to.zero.pseudo %v1210
      %s1212 = ssub.s32 %s1197, %s1195
      %s1213 = ssub.s32 0, %s1212
      %p1214 = scmp.gt.s32.totalorder %s1212, %s1213
      %s1215 = scalar_select %p1214, %s1212, %s1213
      %v1216 = vstv %s1197
      %v1217 = vsub.s32 %v1216, %v1211
      %v1218 = vsub.s32 0, %v1217
      %vm1219 = vcmp.gt.s32.totalorder %v1217, %v1218
      %v1220 = vsel %vm1219, %v1217, %v1218
      %v1221 = vstv %s1215
      %vm1222 = vcmp.gt.s32.totalorder %v1221, %v1220
      %v1223 = vsel %vm1222, %v1221, %v1220
      %vm1224 = vcmp.eq.s32.totalorder %v1223, 0
      %vm1225 = vcmp.gt.s32.totalorder %v1223, 0
      %p1226 = scmp.eq.s32.totalorder %s1215, 0
      %s1227 = scalar_select %p1226, 1, 0
      %v1228 = vstv %s1227
      %vm1229 = vcmp.eq.s32.totalorder %v1228, 1
      %vm1230 = vmand %vm1225, %vm1229
      %vm1231 = vcmp.eq.s32.totalorder %v1220, 0
      %vm1232 = vmand %vm1225, %vm1231
      %v1233 = vsel %vm1230, 1, 0
      %v1234 = vsel %vm1224, 4294967295, %v1233
      %vm1235 = vmor %vm1224, %vm1230
      %v1236 = vsel %vm1232, %v1211, %v1216
      %v1237 = vstv %s1195
      %v1238 = vsel %vm1235, %v1237, %v1236
      %vm1239 = vmor %vm1224, %vm1232
      %v1240 = vsel %vm1239, 1.0, 0.0
      %v1241 = vperm.slane %v357, 0
      %v1242 = vperm.slane %v357, 1
      %v1243 = vsel %vm1191, %v1238, %v1241
      %v1244 = vsel %vm1192, %v1238, %v1242
      %v1245 = vrot.slane %v1244, 7
      %v1246 = vsel %vm1168, %v1243, %v1245
      %1247 = vst.msk [vmem:[%s5] sm:$0x3] %vm1174, %v1246
      %v1248 = vstv %s27
      %vm1249 = vcmp.eq.s32.totalorder %v1177, %v1248
      %v1250 = vld [vmem:[%s6] sm:$0x1]
      %v1251 = vsel %vm1249, %v1234, %v1250
      %vm1252 = vcmask 122880
      %1253 = vst.msk [vmem:[%s6] sm:$0x1] %vm1252, %v1251
      %v1254 = vld [vmem:[%s6 + $0x1] sm:$0x1]
      %v1255 = vsel %vm1249, %v1193, %v1254
      %1256 = vst.msk [vmem:[%s6 + $0x1] sm:$0x1] %vm1252, %v1255
      %v1257 = vrcp.pop 16.0
      %v1258 = vmul.f32 16.0, %v1257
      %v1259 = vsub.f32 1.0, %v1258
      %v1260 = vmul.f32 %v1257, %v1259
      %v1261 = vadd.f32 %v1257, %v1260
      %vm1262 = vweird.f32 %v1257
      %v1263 = vsel %vm1262, %v1257, %v1261
      %v1264 = vmul.f32 %v1179, %v1263
      %v1265 = vmul.f32 %v1180, %v1263
      %v1266 = vfloor.f32 %v1264
      %v1267 = vfloor.f32 %v1265
      %v1268 = vmul.f32 %v1266, 16.0
      %v1269 = vmul.f32 %v1267, 16.0
      %v1270 = vsub.f32 %v1179, %v1268
      %v1271 = vsub.f32 %v1180, %v1269
      %v1272 = vmul.f32 %v1190, %v1263
      %v1273 = vfloor.f32 %v1272
      %v1274 = vmul.f32 %v1273, 16.0
      %v1275 = vsub.f32 %v1190, %v1274
      %v1276 = vsub.f32 %v1266, %v1273
      %v1277 = vsub.f32 %v1267, %v1273
      %v1278 = vsub.f32 %v1270, %v1275
      %v1279 = vsub.f32 %v1271, %v1275
      %v1280 = vmul.f32 %v1276, %v1276
      %v1281 = vmul.f32 %v1277, %v1277
      %v1282 = vmul.f32 %v1278, %v1278
      %v1283 = vmul.f32 %v1279, %v1279
      %v1284 = vadd.f32 %v1280, %v1282
      %v1285 = vadd.f32 %v1281, %v1283
      %v1286 = vsub.f32 0.0, %v1284
      %v1287 = vsub.f32 0.0, %v1285
      %v1288 = vmul.f32 %v1286, 0.6944444
      %v1289 = vmul.f32 %v1287, 0.6944444
      %v1290 = vmul.f32 %v1288, 1.442695
      %v1291 = vpow.pop %v1290
      %v1292 = vmul.f32 %v1289, 1.442695
      %v1293 = vpow.pop %v1292
      %v1294 = vmul.f32 %v1291, 0.15
      %v1295 = vmul.f32 %v1293, 0.15
      %v1296 = vmul.f32 %v1294, %v1240
      %v1297 = vmul.f32 %v1295, %v1240
      %1298 = vxpose.xlu0.b32.start [1/16] %v324, 128
      %1299 = vxpose.xlu0.b32.cont [2/16] 0.0, 128
      %1300 = vxpose.xlu0.b32.cont [3/16] 0.0, 128
      %1301 = vxpose.xlu0.b32.cont [4/16] 0.0, 128
      %1302 = vxpose.xlu0.b32.cont [5/16] 0.0, 128
      %1303 = vxpose.xlu0.b32.cont [6/16] 0.0, 128
      %1304 = vxpose.xlu0.b32.cont [7/16] 0.0, 128
      %1305 = vxpose.xlu0.b32.cont [8/16] 0.0, 128
      %1306 = vxpose.xlu0.b32.cont [9/16] 0.0, 128
      %1307 = vxpose.xlu0.b32.cont [10/16] 0.0, 128
      %1308 = vxpose.xlu0.b32.cont [11/16] 0.0, 128
      %1309 = vxpose.xlu0.b32.cont [12/16] 0.0, 128
      %1310 = vxpose.xlu0.b32.cont [13/16] 0.0, 128
      %1311 = vxpose.xlu0.b32.cont [14/16] 0.0, 128
      %1312 = vxpose.xlu0.b32.cont [15/16] 0.0, 128
      %1313 = vxpose.xlu0.b32.end [16/16] 0.0, 128
      %v1314 = vpop.trf.xlu0
      %v1315 = vpop.trf.xlu0
      %v1316 = vpop.trf.xlu0
      %v1317 = vpop.trf.xlu0
      %v1318 = vpop.trf.xlu0
      %v1319 = vpop.trf.xlu0
      %v1320 = vpop.trf.xlu0
      %v1321 = vpop.trf.xlu0
      %v1322 = vpop.trf.xlu0
      %v1323 = vpop.trf.xlu0
      %v1324 = vpop.trf.xlu0
      %v1325 = vpop.trf.xlu0
      %v1326 = vpop.trf.xlu0
      %v1327 = vpop.trf.xlu0
      %v1328 = vpop.trf.xlu0
      %v1329 = vpop.trf.xlu0
      %1331 = vset.pattern.permute.xlu0 7
      %1332 = vperm.xlu0 %1331, %v1314
      %v1333 = vpop.permute.xlu0 %1332
      %1336 = vset.pattern.permute.xlu0 7
      %1337 = vperm.xlu0 %1336, %v1315
      %v1338 = vpop.permute.xlu0 %1337
      %1341 = vset.pattern.permute.xlu0 7
      %1342 = vperm.xlu0 %1341, %v1316
      %v1343 = vpop.permute.xlu0 %1342
      %1346 = vset.pattern.permute.xlu0 7
      %1347 = vperm.xlu0 %1346, %v1317
      %v1348 = vpop.permute.xlu0 %1347
      %1351 = vset.pattern.permute.xlu0 7
      %1352 = vperm.xlu0 %1351, %v1318
      %v1353 = vpop.permute.xlu0 %1352
      %1356 = vset.pattern.permute.xlu0 7
      %1357 = vperm.xlu0 %1356, %v1319
      %v1358 = vpop.permute.xlu0 %1357
      %1361 = vset.pattern.permute.xlu0 7
      %1362 = vperm.xlu0 %1361, %v1320
      %v1363 = vpop.permute.xlu0 %1362
      %1366 = vset.pattern.permute.xlu0 7
      %1367 = vperm.xlu0 %1366, %v1321
      %v1368 = vpop.permute.xlu0 %1367
      %1371 = vset.pattern.permute.xlu0 7
      %1372 = vperm.xlu0 %1371, %v1322
      %v1373 = vpop.permute.xlu0 %1372
      %1376 = vset.pattern.permute.xlu0 7
      %1377 = vperm.xlu0 %1376, %v1323
      %v1378 = vpop.permute.xlu0 %1377
      %1381 = vset.pattern.permute.xlu0 7
      %1382 = vperm.xlu0 %1381, %v1324
      %v1383 = vpop.permute.xlu0 %1382
      %1386 = vset.pattern.permute.xlu0 7
      %1387 = vperm.xlu0 %1386, %v1325
      %v1388 = vpop.permute.xlu0 %1387
      %1391 = vset.pattern.permute.xlu0 7
      %1392 = vperm.xlu0 %1391, %v1326
      %v1393 = vpop.permute.xlu0 %1392
      %1396 = vset.pattern.permute.xlu0 7
      %1397 = vperm.xlu0 %1396, %v1327
      %v1398 = vpop.permute.xlu0 %1397
      %1401 = vset.pattern.permute.xlu0 7
      %1402 = vperm.xlu0 %1401, %v1328
      %v1403 = vpop.permute.xlu0 %1402
      %1406 = vset.pattern.permute.xlu0 7
      %1407 = vperm.xlu0 %1406, %v1329
      %v1408 = vpop.permute.xlu0 %1407
      %v1410 = vsub.f32 %v1333, %v325
      %v1411 = vsub.f32 %v1333, %v326
      %v1412 = vsub.f32 %v1338, %v327
      %v1413 = vsub.f32 %v1338, %v328
      %v1414 = vsub.f32 %v1343, %v329
      %v1415 = vsub.f32 %v1343, %v330
      %v1416 = vsub.f32 %v1348, %v331
      %v1417 = vsub.f32 %v1348, %v332
      %v1418 = vsub.f32 %v1353, %v333
      %v1419 = vsub.f32 %v1353, %v334
      %v1420 = vsub.f32 %v1358, %v335
      %v1421 = vsub.f32 %v1358, %v336
      %v1422 = vsub.f32 %v1363, %v337
      %v1423 = vsub.f32 %v1363, %v338
      %v1424 = vsub.f32 %v1368, %v339
      %v1425 = vsub.f32 %v1368, %v340
      %v1426 = vsub.f32 %v1373, %v341
      %v1427 = vsub.f32 %v1373, %v342
      %v1428 = vsub.f32 %v1378, %v343
      %v1429 = vsub.f32 %v1378, %v344
      %v1430 = vsub.f32 %v1383, %v345
      %v1431 = vsub.f32 %v1383, %v346
      %v1432 = vsub.f32 %v1388, %v347
      %v1433 = vsub.f32 %v1388, %v348
      %v1434 = vsub.f32 %v1393, %v349
      %v1435 = vsub.f32 %v1393, %v350
      %v1436 = vsub.f32 %v1398, %v351
      %v1437 = vsub.f32 %v1398, %v352
      %v1438 = vsub.f32 %v1403, %v353
      %v1439 = vsub.f32 %v1403, %v354
      %v1440 = vsub.f32 %v1408, %v355
      %v1441 = vsub.f32 %v1408, %v356
      %v1442 = vperm.slane %v1296, 0
      %v1443 = vperm.slane %v1297, 0
      %v1444 = vmul.f32 %v1442, %v1410
      %v1445 = vmul.f32 %v1443, %v1411
      %v1446 = vmul.f32 %v1442, %v1412
      %v1447 = vmul.f32 %v1443, %v1413
      %v1448 = vmul.f32 %v1442, %v1414
      %v1449 = vmul.f32 %v1443, %v1415
      %v1450 = vmul.f32 %v1442, %v1416
      %v1451 = vmul.f32 %v1443, %v1417
      %v1452 = vmul.f32 %v1442, %v1418
      %v1453 = vmul.f32 %v1443, %v1419
      %v1454 = vmul.f32 %v1442, %v1420
      %v1455 = vmul.f32 %v1443, %v1421
      %v1456 = vmul.f32 %v1442, %v1422
      %v1457 = vmul.f32 %v1443, %v1423
      %v1458 = vmul.f32 %v1442, %v1424
      %v1459 = vmul.f32 %v1443, %v1425
      %v1460 = vmul.f32 %v1442, %v1426
      %v1461 = vmul.f32 %v1443, %v1427
      %v1462 = vmul.f32 %v1442, %v1428
      %v1463 = vmul.f32 %v1443, %v1429
      %v1464 = vmul.f32 %v1442, %v1430
      %v1465 = vmul.f32 %v1443, %v1431
      %v1466 = vmul.f32 %v1442, %v1432
      %v1467 = vmul.f32 %v1443, %v1433
      %v1468 = vmul.f32 %v1442, %v1434
      %v1469 = vmul.f32 %v1443, %v1435
      %v1470 = vmul.f32 %v1442, %v1436
      %v1471 = vmul.f32 %v1443, %v1437
      %v1472 = vmul.f32 %v1442, %v1438
      %v1473 = vmul.f32 %v1443, %v1439
      %v1474 = vmul.f32 %v1442, %v1440
      %v1475 = vmul.f32 %v1443, %v1441
      %v1476 = vadd.f32 %v325, %v1444
      %v1477 = vadd.f32 %v326, %v1445
      %v1478 = vadd.f32 %v327, %v1446
      %v1479 = vadd.f32 %v328, %v1447
      %v1480 = vadd.f32 %v329, %v1448
      %v1481 = vadd.f32 %v330, %v1449
      %v1482 = vadd.f32 %v331, %v1450
      %v1483 = vadd.f32 %v332, %v1451
      %v1484 = vadd.f32 %v333, %v1452
      %v1485 = vadd.f32 %v334, %v1453
      %v1486 = vadd.f32 %v335, %v1454
      %v1487 = vadd.f32 %v336, %v1455
      %v1488 = vadd.f32 %v337, %v1456
      %v1489 = vadd.f32 %v338, %v1457
      %v1490 = vadd.f32 %v339, %v1458
      %v1491 = vadd.f32 %v340, %v1459
      %v1492 = vadd.f32 %v341, %v1460
      %v1493 = vadd.f32 %v342, %v1461
      %v1494 = vadd.f32 %v343, %v1462
      %v1495 = vadd.f32 %v344, %v1463
      %v1496 = vadd.f32 %v345, %v1464
      %v1497 = vadd.f32 %v346, %v1465
      %v1498 = vadd.f32 %v347, %v1466
      %v1499 = vadd.f32 %v348, %v1467
      %v1500 = vadd.f32 %v349, %v1468
      %v1501 = vadd.f32 %v350, %v1469
      %v1502 = vadd.f32 %v351, %v1470
      %v1503 = vadd.f32 %v352, %v1471
      %v1504 = vadd.f32 %v353, %v1472
      %v1505 = vadd.f32 %v354, %v1473
      %v1506 = vadd.f32 %v355, %v1474
      %v1507 = vadd.f32 %v356, %v1475
      %1508 = vst [vmem:[%s4] sm:$0xff] %v1476
      %1509 = vst [vmem:[%s4 + $0x8] sm:$0xff] %v1477
      %1510 = vst [vmem:[%s4 + $0x10] sm:$0xff] %v1478
      %1511 = vst [vmem:[%s4 + $0x18] sm:$0xff] %v1479
      %1512 = vst [vmem:[%s4 + $0x20] sm:$0xff] %v1480
      %1513 = vst [vmem:[%s4 + $0x28] sm:$0xff] %v1481
      %1514 = vst [vmem:[%s4 + $0x30] sm:$0xff] %v1482
      %1515 = vst [vmem:[%s4 + $0x38] sm:$0xff] %v1483
      %1516 = vst [vmem:[%s4 + $0x40] sm:$0xff] %v1484
      %1517 = vst [vmem:[%s4 + $0x48] sm:$0xff] %v1485
      %1518 = vst [vmem:[%s4 + $0x50] sm:$0xff] %v1486
      %1519 = vst [vmem:[%s4 + $0x58] sm:$0xff] %v1487
      %1520 = vst [vmem:[%s4 + $0x60] sm:$0xff] %v1488
      %1521 = vst [vmem:[%s4 + $0x68] sm:$0xff] %v1489
      %1522 = vst [vmem:[%s4 + $0x70] sm:$0xff] %v1490
      %1523 = vst [vmem:[%s4 + $0x78] sm:$0xff] %v1491
      %1524 = vst [vmem:[%s4 + $0x80] sm:$0xff] %v1492
      %1525 = vst [vmem:[%s4 + $0x88] sm:$0xff] %v1493
      %1526 = vst [vmem:[%s4 + $0x90] sm:$0xff] %v1494
      %1527 = vst [vmem:[%s4 + $0x98] sm:$0xff] %v1495
      %1528 = vst [vmem:[%s4 + $0xa0] sm:$0xff] %v1496
      %1529 = vst [vmem:[%s4 + $0xa8] sm:$0xff] %v1497
      %1530 = vst [vmem:[%s4 + $0xb0] sm:$0xff] %v1498
      %1531 = vst [vmem:[%s4 + $0xb8] sm:$0xff] %v1499
      %1532 = vst [vmem:[%s4 + $0xc0] sm:$0xff] %v1500
      %1533 = vst [vmem:[%s4 + $0xc8] sm:$0xff] %v1501
      %1534 = vst [vmem:[%s4 + $0xd0] sm:$0xff] %v1502
      %1535 = vst [vmem:[%s4 + $0xd8] sm:$0xff] %v1503
      %1536 = vst [vmem:[%s4 + $0xe0] sm:$0xff] %v1504
      %1537 = vst [vmem:[%s4 + $0xe8] sm:$0xff] %v1505
      %1538 = vst [vmem:[%s4 + $0xf0] sm:$0xff] %v1506
      %1539 = vst [vmem:[%s4 + $0xf8] sm:$0xff] %v1507
      %p1540 = scmp.lt.s32.totalorder %s27, 15
      %s1541 = scalar_select %p1540, %s27, 15
      %s1542 = smul.addr %s1541, 2
      %s1543 = scalar_lea.vmem %s7, %s1542
      // Predicated region
      $region37: #{som_forward_steps.1} parent=31 // pred_check
        %p1544 = pneg %p108
      $region38: #{som_forward_steps.1} parent=31 // pred_check_branch
        %1546 = sbr.rel (%p1544) target = $region40
      $region39: #{som_forward_steps.1} parent=31 // pred_region
        _
      $region40: #{som_forward_steps.1} parent=31 // pred_fallthru
        _
      // Predicated region
      $region41: #{som_forward_steps.1} parent=31 // pred_check
        %p1547 = pneg %p129
      $region42: #{som_forward_steps.1} parent=31 // pred_check_branch
        %1549 = sbr.rel (%p1547) target = $region44
      $region43: #{som_forward_steps.1} parent=31 // pred_region
        _
      $region44: #{som_forward_steps.1} parent=31 // pred_fallthru
        _
      // Predicated region
      $region45: #{som_forward_steps.1} parent=31 // pred_check
        %p1550 = pneg %p150
      $region46: #{som_forward_steps.1} parent=31 // pred_check_branch
        %1552 = sbr.rel (%p1550) target = $region48
      $region47: #{som_forward_steps.1} parent=31 // pred_region
        _
      $region48: #{som_forward_steps.1} parent=31 // pred_fallthru
        _
      // Predicated region
      $region49: #{som_forward_steps.1} parent=31 // pred_check
        %p1553 = pneg %p176
      $region50: #{som_forward_steps.1} parent=31 // pred_check_branch
        %1555 = sbr.rel (%p1553) target = $region52
      $region51: #{som_forward_steps.1} parent=31 // pred_region
        _
      $region52: #{som_forward_steps.1} parent=31 // pred_fallthru
        _
      // Predicated region
      $region53: #{som_forward_steps.1} parent=31 // pred_check
        %p1556 = pneg %p108
      $region54: #{som_forward_steps.1} parent=31 // pred_check_branch
        %1558 = sbr.rel (%p1556) target = $region56
      $region55: #{som_forward_steps.1} parent=31 // pred_region
        _
      $region56: #{som_forward_steps.1} parent=31 // pred_fallthru
        _
      // Predicated region
      $region57: #{som_forward_steps.1} parent=31 // pred_check
        %p1559 = pneg %p129
      $region58: #{som_forward_steps.1} parent=31 // pred_check_branch
        %1561 = sbr.rel (%p1559) target = $region60
      $region59: #{som_forward_steps.1} parent=31 // pred_region
        _
      $region60: #{som_forward_steps.1} parent=31 // pred_fallthru
        _
      // Predicated region
      $region61: #{som_forward_steps.1} parent=31 // pred_check
        %p1562 = pneg %p150
      $region62: #{som_forward_steps.1} parent=31 // pred_check_branch
        %1564 = sbr.rel (%p1562) target = $region64
      $region63: #{som_forward_steps.1} parent=31 // pred_region
        _
      $region64: #{som_forward_steps.1} parent=31 // pred_fallthru
        _
    $region32: #{som_forward_steps.1} parent=5 // pred_fallthru
      _
    %p1565 = scmp.le.s32.totalorder 2, %s22
    // Predicated region
    $region65: #{som_forward_steps.1} parent=5 // pred_check
      %p1566 = pneg %p1565
    $region66: #{som_forward_steps.1} parent=5 // pred_check_branch
      %1568 = sbr.rel (%p1566) target = $region68
    $region67: #{som_forward_steps.1} parent=5 // pred_region
      %s1569 = ssub.s32 %s22, 2
      // Predicated region
      $region69: #{som_forward_steps.1} parent=67 // pred_check
        %p1570 = pneg %p182
      $region70: #{som_forward_steps.1} parent=67 // pred_check_branch
        %1572 = sbr.rel (%p1570) target = $region72
      $region71: #{som_forward_steps.1} parent=67 // pred_region
        %p1573 = scmp.lt.s32.totalorder %s28, 15
        %s1574 = scalar_select %p1573, %s28, 15
        %s1575 = smul.addr %s1574, 2
        %s1576 = scalar_lea.vmem %s7, %s1575
      $region72: #{som_forward_steps.1} parent=67 // pred_fallthru
        _
    $region68: #{som_forward_steps.1} parent=5 // pred_fallthru
      _
  $region6: #{som_forward_steps.1} parent=0 // loop_footer
    %s26 = sadd.s32 1, %s22
  $region7: #{som_forward_steps.1} parent=0 // loop_footer_branch
    %21 = sbr.rel target = $region3
  $region8: #{som_forward_steps.1} parent=0 // loop_exit
    _

</llo_original>
